<compile_context>
chip_gen: v6e
topology: v6e:2x2x1
jax: 0.10.0
libtpu: 0.0.40
codegen_flags: <defaults>
</compile_context>

<pallas_src>
import jax
import jax.numpy as jnp
from jax import lax
from jax.experimental import pallas as pl
from jax.experimental.pallas import tpu as pltpu

# ----------------------------- configuration --------------------------------
Z_DIM = 8
IN_W = 16          # fused input slab lanes: z at 0:8, t at lane 8, rest pad
X_MODE = [0, 2, 3, 1]
N_X_EST = sum(1 if m in (0, 2) else m for m in X_MODE)   # = 6
X_WIDTH = 32       # p_x_z_nn_width,  p_x_z_nn_layers = 2
T_WIDTH = 16       # p_t_z_nn_width,  p_t_z_nn_layers = 1
Y_WIDTH = 32       # p_y_zt_nn_width, p_y_zt_nn_layers = 2
Y_LOSS_TYPE = 2    # -> y heads output (mu, log_std)
BATCH = 32

OUT_W = 128        # lane-dense fused hidden / output width

# fused hidden-state column groups
_X_H = slice(0, X_WIDTH)                                      # 0:32
_Y0_H = slice(X_WIDTH, X_WIDTH + Y_WIDTH)                     # 32:64
_Y1_H = slice(X_WIDTH + Y_WIDTH, X_WIDTH + 2 * Y_WIDTH)       # 64:96
_T_H = slice(X_WIDTH + 2 * Y_WIDTH, X_WIDTH + 2 * Y_WIDTH + T_WIDTH)  # 96:112

# fused output-slab lane offsets
L_XPRED = 0
L_XSTD = N_X_EST             # 6
L_YMU = 2 * N_X_EST          # 12  (y0 head / final y lanes)
L_YSTD = 2 * N_X_EST + 1     # 13
L_TPRED = 2 * N_X_EST + 2    # 14
L_Y1MU = 16                  # y1 head parked here, rolled onto 12-13 in-kernel
L_Y1STD = 17
_Y1_SHIFT = L_Y1MU - L_YMU   # 4

# packed parameter slab row offsets (multiples of 16 -> clean f32/bf16 tiles)
R_W1 = 0           # (16, 128)  fused first-layer weight (t/pad rows zero)
R_B1 = 16          # row 16     fused first-layer bias
R_W2 = 32          # (128,128)  block-diagonal second layer (t block = identity)
R_B2 = 160         # row 160
R_W3 = 176         # (128,128)  merged final layer (x | y0 | t | y1@16-17)
R_B3 = 304         # row 304
PACK_ROWS = 320


# ------------------------------- kernel --------------------------------------
def decoder_kernel(zt_ref, p_ref, out_ref):
    cdt = p_ref.dtype
    # f32 params -> exact multi-pass matmul; bf16 params -> native MXU path.
    prec = lax.Precision.HIGHEST if cdt == jnp.float32 else lax.Precision.DEFAULT

    zt = zt_ref[...]                                      # (bt, 16)
    t = zt[:, Z_DIM:Z_DIM + 1].astype(jnp.float32)        # (bt, 1)

    # static slices of the packed parameter slab (zero-cost, tile-aligned)
    w1 = p_ref[R_W1:R_W1 + IN_W, :]
    b1 = p_ref[R_B1:R_B1 + 1, :]
    w2 = p_ref[R_W2:R_W2 + OUT_W, :]
    b2 = p_ref[R_B2:R_B2 + 1, :]
    w3 = p_ref[R_W3:R_W3 + OUT_W, :]
    b3 = p_ref[R_B3:R_B3 + 1, :]

    def mm(a, b):
        return jnp.dot(a, b, preferred_element_type=jnp.float32, precision=prec)

    # fused layer 1: all four MLP first layers in one MXU push
    h1 = jnp.maximum(mm(zt, w1) + b1, 0.0).astype(cdt)
    # fused layer 2: block-diagonal (t branch is identity pass-through)
    h2 = jnp.maximum(mm(h1, w2) + b2, 0.0).astype(cdt)
    # merged final layer: x lanes 0:12, y0 lanes 12:14, t lane 14, y1 lanes 16:18
    raw = mm(h2, w3) + b3                                  # (bt, 128) f32

    # exp() on whole vregs (EUP), selected on the log-std lanes (x, y0, y1)
    lane = lax.broadcasted_iota(jnp.int32, raw.shape, 1)
    exp_mask = (((lane >= L_XSTD) & (lane < L_XSTD + N_X_EST))
                | (lane == L_YSTD) | (lane == L_Y1STD))
    proc = jnp.where(exp_mask, jnp.exp(raw), raw)

    # align the y1 head (lanes 16-17) onto the y lanes (12-13); XLU rotate
    rolled = pltpu.roll(proc, shift=OUT_W - _Y1_SHIFT, axis=1)

    # treatment mixing only on the y lanes: out = y0 + t*(y1 - y0)
    y_mask = (lane == L_YMU) | (lane == L_YSTD)
    diff = jnp.where(y_mask, rolled - proc, 0.0)
    out_ref[...] = (proc + t * diff).astype(out_ref.dtype)  # one unmasked store


# ------------------------------- wrapper --------------------------------------
def _pick_block_b(B):
    # Large tiles amortize ~0.35us/step overhead; prefer >=2 grid steps so the
    # "parallel" batch axis shards across both v7x TensorCores.  16-row
    # alignment keeps bf16 sublane tiles clean.
    for bt in (2048, 1024, 512, 256, 128, 64, 32, 16):
        if bt < B and B % bt == 0:
            return bt
    return B


def decoder_forward(z, t, packed_params, *, block_b=None, out_dtype=jnp.float32):
    """z: (B, Z_DIM) f32, t: (B, 1) f32, packed_params: (PACK_ROWS, 128)."""
    B = z.shape[0]
    in_dtype = packed_params.dtype

    # fold t into the z slab host-side: one lane-dense input DMA stream
    zt = jnp.zeros((B, IN_W), in_dtype)
    zt = zt.at[:, :Z_DIM].set(z.astype(in_dtype))
    zt = zt.at[:, Z_DIM:Z_DIM + 1].set(t.astype(in_dtype))

    bt = _pick_block_b(B) if block_b is None else block_b
    assert B % bt == 0 and (bt % 8 == 0 or bt == B), "batch tile must be 8-aligned"
    grid = (B // bt,)

    out = pl.pallas_call(
        decoder_kernel,
        out_shape=jax.ShapeDtypeStruct((B, OUT_W), out_dtype),
        grid=grid,
        in_specs=[
            pl.BlockSpec((bt, IN_W), lambda i: (i, 0)),
            # constant weight slab: whole-array VMEM operand -> copied in once,
            # single-buffered, shared across all grid steps (no per-step refetch
            # and no double-buffer allocation).
            pl.BlockSpec(memory_space=pltpu.MemorySpace.VMEM),
        ],
        out_specs=pl.BlockSpec((bt, OUT_W), lambda i: (i, 0)),
        compiler_params=pltpu.CompilerParams(
            dimension_semantics=("parallel",)),
    )(zt, packed_params)

    out = out.astype(jnp.float32)
    x_pred = out[:, L_XPRED:L_XPRED + N_X_EST]
    x_std = out[:, L_XSTD:L_XSTD + N_X_EST]
    y_mu = out[:, L_YMU:L_YMU + 1]
    y_std = out[:, L_YSTD:L_YSTD + 1]
    t_pred = out[:, L_TPRED:L_TPRED + 1]
    return x_pred, x_std, t_pred, y_mu, y_std


# --------------------------- parameter init -----------------------------------
def init_params(key):
    """Deterministic synthetic init. Weights stored as (in, out), biases (1, out)."""
    def linear(k, d_in, d_out, scale=0.2):
        kw, kb = jax.random.split(k)
        w = scale * jax.random.normal(kw, (d_in, d_out), dtype=jnp.float32)
        b = scale * jax.random.normal(kb, (1, d_out), dtype=jnp.float32)
        return w, b

    keys = jax.random.split(key, 11)
    params = []
    # x_nn: 8 -> 32 -> 32 -> 12
    for i, (di, do) in enumerate([(Z_DIM, X_WIDTH), (X_WIDTH, X_WIDTH),
                                  (X_WIDTH, 2 * N_X_EST)]):
        params += list(linear(keys[i], di, do))
    # y0_nn: 8 -> 32 -> 32 -> 2
    for i, (di, do) in enumerate([(Z_DIM, Y_WIDTH), (Y_WIDTH, Y_WIDTH),
                                  (Y_WIDTH, Y_LOSS_TYPE)]):
        params += list(linear(keys[3 + i], di, do))
    # y1_nn: 8 -> 32 -> 32 -> 2
    for i, (di, do) in enumerate([(Z_DIM, Y_WIDTH), (Y_WIDTH, Y_WIDTH),
                                  (Y_WIDTH, Y_LOSS_TYPE)]):
        params += list(linear(keys[6 + i], di, do))
    # t_nn: 8 -> 16 -> 1
    for i, (di, do) in enumerate([(Z_DIM, T_WIDTH), (T_WIDTH, 1)]):
        params += list(linear(keys[9 + i], di, do))
    return params


def pack_params(params, dtype=jnp.float32):
    """Lane-fuse the 22 per-layer arrays into one (PACK_ROWS, 128) slab."""
    (xw0, xb0, xw1, xb1, xw2, xb2,
     y0w0, y0b0, y0w1, y0b1, y0w2, y0b2,
     y1w0, y1b0, y1w1, y1b1, y1w2, y1b2,
     tw0, tb0, tw1, tb1) = params
    f32 = jnp.float32

    # layer 1 (fused along out lanes); input rows 8:16 (t + pad lanes) stay zero
    w1 = jnp.zeros((IN_W, OUT_W), f32)
    w1 = w1.at[:Z_DIM, _X_H].set(xw0)
    w1 = w1.at[:Z_DIM, _Y0_H].set(y0w0)
    w1 = w1.at[:Z_DIM, _Y1_H].set(y1w0)
    w1 = w1.at[:Z_DIM, _T_H].set(tw0)
    b1 = jnp.zeros((1, OUT_W), f32)
    b1 = b1.at[:, _X_H].set(xb0)
    b1 = b1.at[:, _Y0_H].set(y0b0)
    b1 = b1.at[:, _Y1_H].set(y1b0)
    b1 = b1.at[:, _T_H].set(tb0)

    # layer 2 (block-diagonal; t branch = identity, zero bias, ReLU idempotent)
    w2 = jnp.zeros((OUT_W, OUT_W), f32)
    w2 = w2.at[_X_H, _X_H].set(xw1)
    w2 = w2.at[_Y0_H, _Y0_H].set(y0w1)
    w2 = w2.at[_Y1_H, _Y1_H].set(y1w1)
    w2 = w2.at[_T_H, _T_H].set(jnp.eye(T_WIDTH, dtype=f32))
    b2 = jnp.zeros((1, OUT_W), f32)
    b2 = b2.at[:, _X_H].set(xb1)
    b2 = b2.at[:, _Y0_H].set(y0b1)
    b2 = b2.at[:, _Y1_H].set(y1b1)

    # merged final layer: x -> lanes 0:12, y0 -> 12:14, t -> 14, y1 -> 16:18
    w3 = jnp.zeros((OUT_W, OUT_W), f32)
    w3 = w3.at[_X_H, L_XPRED:L_XPRED + 2 * N_X_EST].set(xw2)
    w3 = w3.at[_Y0_H, L_YMU:L_YMU + Y_LOSS_TYPE].set(y0w2)
    w3 = w3.at[_Y1_H, L_Y1MU:L_Y1MU + Y_LOSS_TYPE].set(y1w2)
    w3 = w3.at[_T_H, L_TPRED:L_TPRED + 1].set(tw1)
    b3 = jnp.zeros((1, OUT_W), f32)
    b3 = b3.at[:, L_XPRED:L_XPRED + 2 * N_X_EST].set(xb2)
    b3 = b3.at[:, L_YMU:L_YMU + Y_LOSS_TYPE].set(y0b2)
    b3 = b3.at[:, L_Y1MU:L_Y1MU + Y_LOSS_TYPE].set(y1b2)
    b3 = b3.at[:, L_TPRED:L_TPRED + 1].set(tb1)

    slab = jnp.zeros((PACK_ROWS, OUT_W), f32)
    slab = slab.at[R_W1:R_W1 + IN_W].set(w1)
    slab = slab.at[R_B1:R_B1 + 1].set(b1)
    slab = slab.at[R_W2:R_W2 + OUT_W].set(w2)
    slab = slab.at[R_B2:R_B2 + 1].set(b2)
    slab = slab.at[R_W3:R_W3 + OUT_W].set(w3)
    slab = slab.at[R_B3:R_B3 + 1].set(b3)
    return slab.astype(dtype)


# ------------------------------ reference --------------------------------------
def decoder_ref(z, t, params, cast_dtype=None):
    """Pure-JAX reference.  cast_dtype=bf16 mirrors the kernel's bf16 path
    (same rounding of weights / inputs / inter-layer activations)."""
    f32 = jnp.float32
    if cast_dtype is None:
        c = lambda a: a.astype(f32)
    else:
        c = lambda a: a.astype(cast_dtype).astype(f32)

    def mlp(h, wbs):
        h = c(h)
        for i, (w, b) in enumerate(wbs):
            h = jnp.dot(h, c(w), precision=lax.Precision.HIGHEST) + c(b)
            if i < len(wbs) - 1:
                h = c(jnp.maximum(h, 0.0))
        return h

    p = params
    xw = [(p[0], p[1]), (p[2], p[3]), (p[4], p[5])]
    y0w = [(p[6], p[7]), (p[8], p[9]), (p[10], p[11])]
    y1w = [(p[12], p[13]), (p[14], p[15]), (p[16], p[17])]
    tw = [(p[18], p[19]), (p[20], p[21])]

    x_res = mlp(z, xw)
    x_pred = x_res[:, :N_X_EST]
    x_std = jnp.exp(x_res[:, N_X_EST:])
    y0 = mlp(z, y0w)
    y1 = mlp(z, y1w)
    y_mu = y1[:, :1] * t + y0[:, :1] * (1.0 - t)
    y_std = jnp.exp(y1[:, 1:]) * t + jnp.exp(y0[:, 1:]) * (1.0 - t)
    t_pred = mlp(z, tw)
    return x_pred, x_std, t_pred, y_mu, y_std


# -------------------------------- main ------------------------------------------
if __name__ == "__main__":
    key = jax.random.PRNGKey(0)
    kz, kt, kp = jax.random.split(key, 3)

    z = jax.random.normal(kz, (BATCH, Z_DIM), dtype=jnp.float32)
    # treatment indicator t in {0,1}, shape (B, 1) like the PyTorch model expects
    t = jax.random.bernoulli(kt, 0.5, (BATCH, 1)).astype(jnp.float32)
    params = init_params(kp)

    names = ("x_pred", "x_std", "t_pred", "y_mu", "y_std")

    # ---- f32 weight path: tight check against the f32 reference ----
    outs = decoder_forward(z, t, pack_params(params, jnp.float32))
    outs = jax.block_until_ready(outs)
    refs = decoder_ref(z, t, params)
    for name, o, r in zip(names, outs, refs):
        assert o.shape == r.shape, (name, o.shape, r.shape)
        assert jnp.allclose(o, r, rtol=1e-3, atol=1e-3), f"f32 mismatch: {name}"

    # ---- bf16 weight/activation path (MXU-native production config for
    #      v5e/v6e/v7x), checked against an identically-rounded reference ----
    outs_bf = decoder_forward(z, t, pack_params(params, jnp.bfloat16))
    outs_bf = jax.block_until_ready(outs_bf)
    refs_bf = decoder_ref(z, t, params, cast_dtype=jnp.bfloat16)
    for name, o, r in zip(names, outs_bf, refs_bf):
        assert o.shape == r.shape, (name, o.shape, r.shape)
        assert jnp.allclose(o, r, rtol=1e-3, atol=1e-3), f"bf16 mismatch: {name}"

    print("KERNEL_OK")
</pallas_src>

<mosaic_0001>
module attributes {stable_mosaic.version = 11 : i64} {
  func.func @decoder_kernel(%arg0: i32, %arg1: memref<16x16xf32, #tpu.memory_space<vmem>>, %arg2: memref<320x128xf32, #tpu.memory_space<vmem>>, %arg3: memref<16x128xf32, #tpu.memory_space<vmem>>) attributes {dimension_semantics = [#tpu.dimension_semantics<parallel>], iteration_bounds = array<i64: 2>, scalar_prefetch = 0 : i64, scratch_operands = 0 : i64, tpu.core_type = #tpu.core_type<tc>, window_params = [{transform_indices = @transform_0, window_bounds = array<i64: 16, 16>}, {pipeline_mode = #tpu.pipeline_mode<synchronous>, transform_indices = @transform_1, window_bounds = array<i64: 320, 128>}, {transform_indices = @transform_2, window_bounds = array<i64: 16, 128>}]} {
    %c0 = arith.constant 0 : index
    %c0_0 = arith.constant 0 : index
    %0 = vector.load %arg1[%c0, %c0_0] : memref<16x16xf32, #tpu.memory_space<vmem>>, vector<16x16xf32>
    %1 = vector.extract_strided_slice %0 {offsets = [0, 8], sizes = [16, 1], strides = [1, 1]} : vector<16x16xf32> to vector<16x1xf32>
    %c0_1 = arith.constant 0 : index
    %c0_2 = arith.constant 0 : index
    %2 = vector.load %arg2[%c0_1, %c0_2] : memref<320x128xf32, #tpu.memory_space<vmem>>, vector<16x128xf32>
    %c16 = arith.constant 16 : index
    %c0_3 = arith.constant 0 : index
    %3 = vector.load %arg2[%c16, %c0_3] : memref<320x128xf32, #tpu.memory_space<vmem>>, vector<1x128xf32>
    %c32 = arith.constant 32 : index
    %c0_4 = arith.constant 0 : index
    %4 = vector.load %arg2[%c32, %c0_4] : memref<320x128xf32, #tpu.memory_space<vmem>>, vector<128x128xf32>
    %c160 = arith.constant 160 : index
    %c0_5 = arith.constant 0 : index
    %5 = vector.load %arg2[%c160, %c0_5] : memref<320x128xf32, #tpu.memory_space<vmem>>, vector<1x128xf32>
    %c176 = arith.constant 176 : index
    %c0_6 = arith.constant 0 : index
    %6 = vector.load %arg2[%c176, %c0_6] : memref<320x128xf32, #tpu.memory_space<vmem>>, vector<128x128xf32>
    %c304 = arith.constant 304 : index
    %c0_7 = arith.constant 0 : index
    %7 = vector.load %arg2[%c304, %c0_7] : memref<320x128xf32, #tpu.memory_space<vmem>>, vector<1x128xf32>
    %cst = arith.constant dense<0.000000e+00> : vector<16x128xf32>
    %8 = tpu.matmul %0, %2, %cst {dimension_numbers = #tpu.dot_dimension_numbers<[1], [0], [0], [1], [0, 0, 1, 1], [], []>, precision = #tpu.contract_precision<fp32>} : vector<16x16xf32>, vector<16x128xf32>, vector<16x128xf32> -> vector<16x128xf32>
    %9 = vector.broadcast %3 : vector<1x128xf32> to vector<16x128xf32>
    %10 = arith.addf %8, %9 : vector<16x128xf32>
    %cst_8 = arith.constant 0.000000e+00 : f32
    %11 = vector.broadcast %cst_8 : f32 to vector<16x128xf32>
    %12 = arith.maximumf %10, %11 : vector<16x128xf32>
    %cst_9 = arith.constant dense<0.000000e+00> : vector<16x128xf32>
    %13 = tpu.matmul %12, %4, %cst_9 {dimension_numbers = #tpu.dot_dimension_numbers<[1], [0], [0], [1], [0, 0, 1, 1], [], []>, precision = #tpu.contract_precision<fp32>} : vector<16x128xf32>, vector<128x128xf32>, vector<16x128xf32> -> vector<16x128xf32>
    %14 = vector.broadcast %5 : vector<1x128xf32> to vector<16x128xf32>
    %15 = arith.addf %13, %14 : vector<16x128xf32>
    %cst_10 = arith.constant 0.000000e+00 : f32
    %16 = vector.broadcast %cst_10 : f32 to vector<16x128xf32>
    %17 = arith.maximumf %15, %16 : vector<16x128xf32>
    %cst_11 = arith.constant dense<0.000000e+00> : vector<16x128xf32>
    %18 = tpu.matmul %17, %6, %cst_11 {dimension_numbers = #tpu.dot_dimension_numbers<[1], [0], [0], [1], [0, 0, 1, 1], [], []>, precision = #tpu.contract_precision<fp32>} : vector<16x128xf32>, vector<128x128xf32>, vector<16x128xf32> -> vector<16x128xf32>
    %19 = vector.broadcast %7 : vector<1x128xf32> to vector<16x128xf32>
    %20 = arith.addf %18, %19 : vector<16x128xf32>
    %21 = tpu.iota {dimensions = array<i32: 1>} : vector<16x128xi32>
    %c6_i32 = arith.constant 6 : i32
    %22 = vector.broadcast %c6_i32 : i32 to vector<16x128xi32>
    %23 = arith.cmpi sge, %21, %22 : vector<16x128xi32>
    %c12_i32 = arith.constant 12 : i32
    %24 = vector.broadcast %c12_i32 : i32 to vector<16x128xi32>
    %25 = arith.cmpi slt, %21, %24 : vector<16x128xi32>
    %26 = arith.andi %23, %25 : vector<16x128xi1>
    %c13_i32 = arith.constant 13 : i32
    %27 = vector.broadcast %c13_i32 : i32 to vector<16x128xi32>
    %28 = arith.cmpi eq, %21, %27 : vector<16x128xi32>
    %29 = arith.ori %26, %28 : vector<16x128xi1>
    %c17_i32 = arith.constant 17 : i32
    %30 = vector.broadcast %c17_i32 : i32 to vector<16x128xi32>
    %31 = arith.cmpi eq, %21, %30 : vector<16x128xi32>
    %32 = arith.ori %29, %31 : vector<16x128xi1>
    %33 = math.exp %20 : vector<16x128xf32>
    %34 = arith.select %32, %33, %20 : vector<16x128xi1>, vector<16x128xf32>
    %c124_i32 = arith.constant 124 : i32
    %35 = tpu.dynamic_rotate %34 by %c124_i32 dim 1 : vector<16x128xf32>, i32 -> vector<16x128xf32>
    %c12_i32_12 = arith.constant 12 : i32
    %36 = vector.broadcast %c12_i32_12 : i32 to vector<16x128xi32>
    %37 = arith.cmpi eq, %21, %36 : vector<16x128xi32>
    %c13_i32_13 = arith.constant 13 : i32
    %38 = vector.broadcast %c13_i32_13 : i32 to vector<16x128xi32>
    %39 = arith.cmpi eq, %21, %38 : vector<16x128xi32>
    %40 = arith.ori %37, %39 : vector<16x128xi1>
    %41 = arith.subf %35, %34 : vector<16x128xf32>
    %cst_14 = arith.constant 0.000000e+00 : f32
    %42 = vector.broadcast %cst_14 : f32 to vector<16x128xf32>
    %43 = arith.select %40, %41, %42 : vector<16x128xi1>, vector<16x128xf32>
    %44 = vector.broadcast %1 : vector<16x1xf32> to vector<16x128xf32>
    %45 = arith.mulf %44, %43 : vector<16x128xf32>
    %46 = arith.addf %34, %45 : vector<16x128xf32>
    %c0_15 = arith.constant 0 : index
    %c0_16 = arith.constant 0 : index
    %47 = vector.load %arg3[%c0_15, %c0_16] : memref<16x128xf32, #tpu.memory_space<vmem>>, vector<16x128xf32>
    tpu.vector_store %arg3[%c0_15, %c0_16], %46 {strides = array<i32>} : memref<16x128xf32, #tpu.memory_space<vmem>>, vector<16x128xf32>,
    return
  }
  func.func @transform_0(%arg0: i32) -> (i32, i32) {
    %c0_i32 = arith.constant 0 : i32
    %c0_i32_0 = arith.constant 0 : i32
    return %arg0, %c0_i32 : i32, i32
  }
  func.func @transform_1(%arg0: i32) -> (i32, i32) {
    %c0_i32 = arith.constant 0 : i32
    %c0_i32_0 = arith.constant 0 : i32
    %c0_i32_1 = arith.constant 0 : i32
    return %c0_i32, %c0_i32_0 : i32, i32
  }
  func.func @transform_2(%arg0: i32) -> (i32, i32) {
    %c0_i32 = arith.constant 0 : i32
    %c0_i32_0 = arith.constant 0 : i32
    return %arg0, %c0_i32 : i32, i32
  }
}

</mosaic_0001>

<llo_original>
// kernel: tpu_custom_call.1
$region0: #{tpu_custom_call.1}
  #allocation0 [shape = 'u32[]', space=smem, size = 0x4, offset = 0x4, fixed_abs, tag = 'smem constant byte address 0x4 - core index']
  #allocation1 [shape = 'u32[144,128]{1,0:T(1,128)}', space=vmem, size = 0x12000, scoped, tag = 'internal scratch']
  %s0 = inlined_call_operand.vmem [shape: f32[32,16], index: 0, kind: input, shape index: {}]
  %s1 = inlined_call_operand.hbm [shape: f32[320,128], index: 1, kind: input, shape index: {}]
  %s2 = inlined_call_operand.hbm [shape: f32[32,128], index: 2, kind: output, shape index: {}]
  %s3 = sld [smem:[#allocation0]]
  $region45: #{tpu_custom_call.1} parent=0
    _
  %s5 = ssub.s32 1, %s3
  %s6 = scalar_select 0, %s5, %s3
  $region1: #{tpu_custom_call.1} parent=0
    #allocation2 [shape = 'u8[163840]{0}', space=vmem, size = 0x28000, scoped, tag = 'input window, operand 1, single buffered']
    #allocation3 [shape = 's32[2]{0}', space=sflag, size = 0x8, scoped, tag = 'scoped memory for tpu_custom_call.1']
    #allocation4 [shape = 's32[2]{0}', space=sflag, size = 0x8, scoped, tag = 'scoped memory for tpu_custom_call.1']
    #allocation5 [shape = 'u8[16384]{0}', space=vmem, size = 0x4000, scoped, tag = 'output window, operand 0']
    %7 = vsyncpa [#allocation3], 0
    %8 = vsyncpa [#allocation4], 0
    %s9 = scalar_lea.sflag [#allocation4], 1
    %10 = vsyncpa %s9, 0
    loop: start=0, step=1, limit=4
    $region2: #{tpu_custom_call.1} parent=1 // loop_pre_header
      _
    $region3: #{tpu_custom_call.1} parent=1 // loop_header
      %s12 = sphi 0, %s16
      %p13 = scmp.ge.s32.totalorder %s12, 4
      %s22 = sphi 0, %s24
      %s25 = sphi 0, %s22
      %s26 = sphi 0, %s25
      %s42 = sphi 0, %s26
      %s46 = sphi 0, %s46
      %s48 = sphi 0, %s46
      %s49 = sphi 0, %s48
      %s63 = sphi 0, %s49
      %s69 = sphi 0, %s71
      %s72 = sphi 0, %s69
      %s73 = sphi 0, %s72
      %s89 = sphi 0, %s73
    $region4: #{tpu_custom_call.1} parent=1 // loop_header_branch
      %15 = sbr.rel (%p13) target = $region8
    $region5: #{tpu_custom_call.1} parent=1 // loop_body
      %s17 = ssub.s32 %s12, 1
      %s18 = ssub.s32 %s12, 2
      %s19 = sadd.s32 %s12, 1
      %s20 = ssub.s32 %s12, %s19
      %p21 = scmp.eq.s32.totalorder %s20, 0
      %s23 = sadd.s32 %s22, 1
      %s24 = scalar_select %p21, %s22, %s23
      %p27 = pneg %p21
      %p28 = scmp.eq.s32.totalorder %s12, 1
      %p29 = por %p27, %p28
      %p30 = scmp.ne.s32.totalorder %s22, %s25
      %p31 = scmp.eq.s32.totalorder %s12, 0
      %p32 = por %p30, %p31
      %p33 = scmp.ne.s32.totalorder %s22, %s25
      %p34 = scmp.eq.s32.totalorder %s17, 1
      %p35 = por %p33, %p34
      %p36 = scmp.ne.s32.totalorder %s25, %s26
      %p37 = scmp.eq.s32.totalorder %s17, 0
      %p38 = por %p36, %p37
      %p39 = scmp.ne.s32.totalorder %s25, %s26
      %p40 = scmp.eq.s32.totalorder %s18, 1
      %p41 = por %p39, %p40
      %p43 = scmp.ne.s32.totalorder %s26, %s42
      %p44 = scmp.eq.s32.totalorder %s18, 0
      %p45 = por %p43, %p44
      %s47 = sadd.s32 %s46, 1
      %p50 = scmp.eq.s32.totalorder %s12, 1
      %p51 = scmp.ne.s32.totalorder %s46, %s48
      %p52 = scmp.eq.s32.totalorder %s12, 0
      %p53 = por %p51, %p52
      %p54 = scmp.ne.s32.totalorder %s46, %s48
      %p55 = scmp.eq.s32.totalorder %s17, 1
      %p56 = por %p54, %p55
      %p57 = scmp.ne.s32.totalorder %s48, %s49
      %p58 = scmp.eq.s32.totalorder %s17, 0
      %p59 = por %p57, %p58
      %p60 = scmp.ne.s32.totalorder %s48, %s49
      %p61 = scmp.eq.s32.totalorder %s18, 1
      %p62 = por %p60, %p61
      %p64 = scmp.ne.s32.totalorder %s49, %s63
      %p65 = scmp.eq.s32.totalorder %s18, 0
      %p66 = por %p64, %p65
      %s67 = ssub.s32 %s12, %s19
      %p68 = scmp.eq.s32.totalorder %s67, 0
      %s70 = sadd.s32 %s69, 1
      %s71 = scalar_select %p68, %s69, %s70
      %p74 = pneg %p68
      %p75 = scmp.eq.s32.totalorder %s12, 1
      %p76 = por %p74, %p75
      %p77 = scmp.ne.s32.totalorder %s69, %s72
      %p78 = scmp.eq.s32.totalorder %s12, 0
      %p79 = por %p77, %p78
      %p80 = scmp.ne.s32.totalorder %s69, %s72
      %p81 = scmp.eq.s32.totalorder %s17, 1
      %p82 = por %p80, %p81
      %p83 = scmp.ne.s32.totalorder %s72, %s73
      %p84 = scmp.eq.s32.totalorder %s17, 0
      %p85 = por %p83, %p84
      %p86 = scmp.ne.s32.totalorder %s72, %s73
      %p87 = scmp.eq.s32.totalorder %s18, 1
      %p88 = por %p86, %p87
      %p90 = scmp.ne.s32.totalorder %s73, %s89
      %p91 = scmp.eq.s32.totalorder %s18, 0
      %p92 = por %p90, %p91
      %p93 = scmp.le.s32.totalorder 1, %s12
      %p94 = scmp.lt.s32.totalorder %s12, 3
      %p95 = pnand %p93, %p94
      %p96 = pneg %p95
      // Predicated region
      $region9: #{tpu_custom_call.1} parent=5 // pred_check
        _
      $region10: #{tpu_custom_call.1} parent=5 // pred_check_branch
        %98 = sbr.rel (%p95) target = $region12
      $region11: #{tpu_custom_call.1} parent=5 // pred_region
        %s99 = ssub.s32 %s12, 1
        // Predicated region
        $region13: #{tpu_custom_call.1} parent=11 // pred_check
          %p100 = pneg %p59
        $region14: #{tpu_custom_call.1} parent=11 // pred_check_branch
          %102 = sbr.rel (%p100) target = $region16
        $region15: #{tpu_custom_call.1} parent=11 // pred_region
          %s104 = ssub.s32 5120, 5120
          %105 = vsyncadd [#allocation3], %s104
          %s106 = sshll.u32 [#allocation2], 4
          %s107 = int_to_ptr.vmem [resolvable:$true] %s106
          %112 = dma.hbm_to_vmem [thread:$0]  %s1, 5120, %s107, [#allocation3], 128, 128, 8
        $region16: #{tpu_custom_call.1} parent=11 // pred_fallthru
          _
      $region12: #{tpu_custom_call.1} parent=5 // pred_fallthru
        _
      %p113 = scmp.lt.s32.totalorder %s12, 2
      // Predicated region
      $region17: #{tpu_custom_call.1} parent=5 // pred_check
        %p114 = pneg %p113
      $region18: #{tpu_custom_call.1} parent=5 // pred_check_branch
        %116 = sbr.rel (%p114) target = $region20
      $region19: #{tpu_custom_call.1} parent=5 // pred_region
        // Predicated region
        $region21: #{tpu_custom_call.1} parent=19 // pred_check
          %p117 = pneg %p32
        $region22: #{tpu_custom_call.1} parent=19 // pred_check_branch
          %119 = sbr.rel (%p117) target = $region24
        $region23: #{tpu_custom_call.1} parent=19 // pred_region
          %s120 = smul.u32 2, %s12
          %p121 = scmp.lt.s32.totalorder %s120, 3
          %s122 = scalar_select %p121, %s120, 3
          %s123 = smul.addr %s122, 8
          %s124 = scalar_lea.vmem %s0, %s123
          %s125 = smul.u32 2, %s12
        $region24: #{tpu_custom_call.1} parent=19 // pred_fallthru
          _
      $region20: #{tpu_custom_call.1} parent=5 // pred_fallthru
        _
      %p126 = scmp.le.s32.totalorder 1, %s12
      %p127 = scmp.lt.s32.totalorder %s12, 3
      %p128 = pnand %p126, %p127
      %p129 = pneg %p128
      // Predicated region
      $region25: #{tpu_custom_call.1} parent=5 // pred_check
        _
      $region26: #{tpu_custom_call.1} parent=5 // pred_check_branch
        %131 = sbr.rel (%p128) target = $region28
      $region27: #{tpu_custom_call.1} parent=5 // pred_region
        %s132 = ssub.s32 %s12, 1
        // Predicated region
        $region29: #{tpu_custom_call.1} parent=27 // pred_check
          %p133 = pneg %p59
        $region30: #{tpu_custom_call.1} parent=27 // pred_check_branch
          %135 = sbr.rel (%p133) target = $region32
        $region31: #{tpu_custom_call.1} parent=27 // pred_region
          %136 = dma.done [#allocation3], 5120
        $region32: #{tpu_custom_call.1} parent=27 // pred_fallthru
          _
        %s137 = smul.u32 2, %s17
        %p138 = scmp.lt.s32.totalorder %s137, 3
        %s139 = scalar_select %p138, %s137, 3
        %s140 = smul.addr %s139, 8
        %s141 = scalar_lea.vmem %s0, %s140
        %p142 = pneg %p38
        %p143 = pneg %p35
        %p144 = pneg %p59
        %p145 = pneg %p56
        %p146 = pneg %p85
        %p147 = pneg %p82
        %s148 = sand.u32 %s72, 1
        %s149 = scalar_lea.sflag [#allocation4], %s148
        %s150 = sand.u32 %s72, 1
        %s151 = smul.addr %s150, 16
        %s152 = scalar_lea.vmem [#allocation5], %s151
        %s153 = smul.u32 2, %s17
        %p154 = scmp.lt.s32.totalorder %s153, 3
        %s155 = scalar_select %p154, %s153, 3
        %s156 = smul.addr %s155, 8
        %s157 = scalar_lea.vmem %s0, %s156
        %s158 = smul.u32 2, %s17
        %s159 = smul.u32 2, %s17
        %v160 = vld [vmem:[%s157] sm:$0xff]
        %v161 = vld [vmem:[%s157 + $0x8] sm:$0xff]
        %v162 = vld [vmem:[#allocation2] sm:$0xff]
        %v163 = vld [vmem:[#allocation2 + $0x8] sm:$0xff]
        %v164 = vld [vmem:[#allocation2 + $0x10] sm:$0x1]
        %v165 = vld [vmem:[#allocation2 + $0x20] sm:$0xff]
        %v166 = vld [vmem:[#allocation2 + $0x28] sm:$0xff]
        %v167 = vld [vmem:[#allocation2 + $0x30] sm:$0xff]
        %v168 = vld [vmem:[#allocation2 + $0x38] sm:$0xff]
        %v169 = vld [vmem:[#allocation2 + $0x40] sm:$0xff]
        %v170 = vld [vmem:[#allocation2 + $0x48] sm:$0xff]
        %v171 = vld [vmem:[#allocation2 + $0x50] sm:$0xff]
        %v172 = vld [vmem:[#allocation2 + $0x58] sm:$0xff]
        %v173 = vld [vmem:[#allocation2 + $0x60] sm:$0xff]
        %v174 = vld [vmem:[#allocation2 + $0x68] sm:$0xff]
        %v175 = vld [vmem:[#allocation2 + $0x70] sm:$0xff]
        %v176 = vld [vmem:[#allocation2 + $0x78] sm:$0xff]
        %v177 = vld [vmem:[#allocation2 + $0x80] sm:$0xff]
        %v178 = vld [vmem:[#allocation2 + $0x88] sm:$0xff]
        %v179 = vld [vmem:[#allocation2 + $0x90] sm:$0xff]
        %v180 = vld [vmem:[#allocation2 + $0x98] sm:$0xff]
        %v181 = vld [vmem:[#allocation2 + $0xa0] sm:$0x1]
        %v182 = vld [vmem:[#allocation2 + $0xb0] sm:$0xff]
        %v183 = vld [vmem:[#allocation2 + $0xb8] sm:$0xff]
        %v184 = vld [vmem:[#allocation2 + $0xc0] sm:$0xff]
        %v185 = vld [vmem:[#allocation2 + $0xc8] sm:$0xff]
        %v186 = vld [vmem:[#allocation2 + $0xd0] sm:$0xff]
        %v187 = vld [vmem:[#allocation2 + $0xd8] sm:$0xff]
        %v188 = vld [vmem:[#allocation2 + $0xe0] sm:$0xff]
        %v189 = vld [vmem:[#allocation2 + $0xe8] sm:$0xff]
        %v190 = vld [vmem:[#allocation2 + $0xf0] sm:$0xff]
        %v191 = vld [vmem:[#allocation2 + $0xf8] sm:$0xff]
        %v192 = vld [vmem:[#allocation2 + $0x100] sm:$0xff]
        %v193 = vld [vmem:[#allocation2 + $0x108] sm:$0xff]
        %v194 = vld [vmem:[#allocation2 + $0x110] sm:$0xff]
        %v195 = vld [vmem:[#allocation2 + $0x118] sm:$0xff]
        %v196 = vld [vmem:[#allocation2 + $0x120] sm:$0xff]
        %v197 = vld [vmem:[#allocation2 + $0x128] sm:$0xff]
        %v198 = vld [vmem:[#allocation2 + $0x130] sm:$0x1]
        %v199 = vlaneseq
        %v200 = vshrl.u32 %v199, 7
        %v201 = vsub.s32 0, %v200
        %v202 = vrot.slane %v164, %v201
        %vm203 = vcmask 130048
        %v205 = vsel %vm203, %v160, 0
        %v208 = vsel %vm203, %v161, 0
        %210 = vmatprep.subr.mxu0 0.0
        %211 = vmatpush1.msra.mxu0 0.0
        %212 = vmatprep.subr.mxu0 0.0
        %213 = vmatpush1.msra.mxu0 0.0
        %214 = vmatprep.subr.mxu0 0.0
        %215 = vmatpush1.msra.mxu0 0.0
        %216 = vmatprep.subr.mxu0 0.0
        %217 = vmatpush1.msra.mxu0 0.0
        %218 = vmatprep.subr.mxu0 0.0
        %219 = vmatpush1.msra.mxu0 0.0
        %220 = vmatprep.subr.mxu0 0.0
        %221 = vmatpush1.msra.mxu0 0.0
        %222 = vmatprep.subr.mxu0 0.0
        %223 = vmatpush1.msra.mxu0 0.0
        %224 = vmatprep.subr.mxu0 0.0
        %225 = vmatpush1.msra.mxu0 0.0
        %226 = vmatprep.subr.mxu0 0.0
        %227 = vmatpush1.msra.mxu0 0.0
        %228 = vmatprep.subr.mxu0 0.0
        %229 = vmatpush1.msra.mxu0 0.0
        %230 = vmatprep.subr.mxu0 0.0
        %231 = vmatpush1.msra.mxu0 0.0
        %232 = vmatprep.subr.mxu0 0.0
        %233 = vmatpush1.msra.mxu0 0.0
        %234 = vmatprep.subr.mxu0 0.0
        %235 = vmatpush1.msra.mxu0 0.0
        %236 = vmatprep.subr.mxu0 0.0
        %237 = vmatpush1.msra.mxu0 0.0
        %238 = vmatprep.subr.mxu0 0.0
        %v239 = vand.u32 %v163, 4294901760
        %240 = vmatpush1.msra.mxu0 %v239
        %241 = vmatprep.subr.mxu0 0.0
        %v242 = vand.u32 %v162, 4294901760
        %243 = vmatpush1.msra.mxu0 %v242
        %244 = vmatprep.subr.mxu0 0.0
        %245 = vmatpush2.msra.mxu0 0.0
        %246 = vmatprep.subr.mxu0 0.0
        %247 = vmatpush2.msra.mxu0 0.0
        %248 = vmatprep.subr.mxu0 0.0
        %249 = vmatpush2.msra.mxu0 0.0
        %250 = vmatprep.subr.mxu0 0.0
        %251 = vmatpush2.msra.mxu0 0.0
        %252 = vmatprep.subr.mxu0 0.0
        %253 = vmatpush2.msra.mxu0 0.0
        %254 = vmatprep.subr.mxu0 0.0
        %255 = vmatpush2.msra.mxu0 0.0
        %256 = vmatprep.subr.mxu0 0.0
        %257 = vmatpush2.msra.mxu0 0.0
        %258 = vmatprep.subr.mxu0 0.0
        %259 = vmatpush2.msra.mxu0 0.0
        %260 = vmatprep.subr.mxu0 0.0
        %261 = vmatpush2.msra.mxu0 0.0
        %262 = vmatprep.subr.mxu0 0.0
        %263 = vmatpush2.msra.mxu0 0.0
        %264 = vmatprep.subr.mxu0 0.0
        %265 = vmatpush2.msra.mxu0 0.0
        %266 = vmatprep.subr.mxu0 0.0
        %267 = vmatpush2.msra.mxu0 0.0
        %268 = vmatprep.subr.mxu0 0.0
        %269 = vmatpush2.msra.mxu0 0.0
        %270 = vmatprep.subr.mxu0 0.0
        %271 = vmatpush2.msra.mxu0 0.0
        %272 = vmatprep.subr.mxu0 0.0
        %273 = vmatpush2.msra.mxu0 0.0
        %274 = vmatprep.subr.mxu0 0.0
        %275 = vmatpush2.msra.mxu0 0.0
        %276 = vmatprep.mubr.f32.mxu0 0.0
        %v277 = vand.u32 %v205, 4294901760
        %v278 = vsub.f32 %v205, %v277
        %v279 = vand.u32 %v278, 4294901760
        %v280 = vsub.f32 %v278, %v279
        %v281 = vand.u32 %v280, 4294901760
        %282 = vmatmul.mubr.f32.gmra.mxu0 %v281
        %v283 = vpop.f32.mrf.mxu0
        %v284 = vadd.f32 %v202, %v283
        %v285 = vpop.f32.mrf.mxu0
        %286 = vmatprep.mubr.f32.mxu0 0.0
        %v287 = vand.u32 %v208, 4294901760
        %v288 = vsub.f32 %v208, %v287
        %v289 = vand.u32 %v288, 4294901760
        %v290 = vsub.f32 %v288, %v289
        %v291 = vand.u32 %v290, 4294901760
        %292 = vmatmul.mubr.f32.gmra.mxu0 %v291
        %v293 = vpop.f32.mrf.mxu0
        %v294 = vadd.f32 %v202, %v293
        %v295 = vpop.f32.mrf.mxu0
        %296 = vdwg.mxu0
        %297 = vmatprep.subr.mxu0 0.0
        %298 = vmatpush1.msra.mxu0 0.0
        %299 = vmatprep.subr.mxu0 0.0
        %300 = vmatpush1.msra.mxu0 0.0
        %301 = vmatprep.subr.mxu0 0.0
        %302 = vmatpush1.msra.mxu0 0.0
        %303 = vmatprep.subr.mxu0 0.0
        %304 = vmatpush1.msra.mxu0 0.0
        %305 = vmatprep.subr.mxu0 0.0
        %306 = vmatpush1.msra.mxu0 0.0
        %307 = vmatprep.subr.mxu0 0.0
        %308 = vmatpush1.msra.mxu0 0.0
        %309 = vmatprep.subr.mxu0 0.0
        %310 = vmatpush1.msra.mxu0 0.0
        %311 = vmatprep.subr.mxu0 0.0
        %312 = vmatpush1.msra.mxu0 0.0
        %313 = vmatprep.subr.mxu0 0.0
        %314 = vmatpush1.msra.mxu0 0.0
        %315 = vmatprep.subr.mxu0 0.0
        %316 = vmatpush1.msra.mxu0 0.0
        %317 = vmatprep.subr.mxu0 0.0
        %318 = vmatpush1.msra.mxu0 0.0
        %319 = vmatprep.subr.mxu0 0.0
        %320 = vmatpush1.msra.mxu0 0.0
        %321 = vmatprep.subr.mxu0 0.0
        %322 = vmatpush1.msra.mxu0 0.0
        %323 = vmatprep.subr.mxu0 0.0
        %324 = vmatpush1.msra.mxu0 0.0
        %325 = vmatprep.subr.mxu0 0.0
        %v326 = vand.u32 %v163, 4294901760
        %v327 = vsub.f32 %v163, %v326
        %v328 = vand.u32 %v327, 4294901760
        %v329 = vsub.f32 %v327, %v328
        %v330 = vand.u32 %v329, 4294901760
        %331 = vmatpush1.msra.mxu0 %v330
        %332 = vmatprep.subr.mxu0 0.0
        %v333 = vand.u32 %v162, 4294901760
        %v334 = vsub.f32 %v162, %v333
        %v335 = vand.u32 %v334, 4294901760
        %v336 = vsub.f32 %v334, %v335
        %v337 = vand.u32 %v336, 4294901760
        %338 = vmatpush1.msra.mxu0 %v337
        %339 = vmatprep.subr.mxu0 0.0
        %340 = vmatpush2.msra.mxu0 0.0
        %341 = vmatprep.subr.mxu0 0.0
        %342 = vmatpush2.msra.mxu0 0.0
        %343 = vmatprep.subr.mxu0 0.0
        %344 = vmatpush2.msra.mxu0 0.0
        %345 = vmatprep.subr.mxu0 0.0
        %346 = vmatpush2.msra.mxu0 0.0
        %347 = vmatprep.subr.mxu0 0.0
        %348 = vmatpush2.msra.mxu0 0.0
        %349 = vmatprep.subr.mxu0 0.0
        %350 = vmatpush2.msra.mxu0 0.0
        %351 = vmatprep.subr.mxu0 0.0
        %352 = vmatpush2.msra.mxu0 0.0
        %353 = vmatprep.subr.mxu0 0.0
        %354 = vmatpush2.msra.mxu0 0.0
        %355 = vmatprep.subr.mxu0 0.0
        %356 = vmatpush2.msra.mxu0 0.0
        %357 = vmatprep.subr.mxu0 0.0
        %358 = vmatpush2.msra.mxu0 0.0
        %359 = vmatprep.subr.mxu0 0.0
        %360 = vmatpush2.msra.mxu0 0.0
        %361 = vmatprep.subr.mxu0 0.0
        %362 = vmatpush2.msra.mxu0 0.0
        %363 = vmatprep.subr.mxu0 0.0
        %364 = vmatpush2.msra.mxu0 0.0
        %365 = vmatprep.subr.mxu0 0.0
        %366 = vmatpush2.msra.mxu0 0.0
        %367 = vmatprep.subr.mxu0 0.0
        %368 = vmatpush2.msra.mxu0 0.0
        %369 = vmatprep.subr.mxu0 0.0
        %370 = vmatpush2.msra.mxu0 0.0
        %371 = vmatprep.mubr.f32.mxu0 0.0
        %v372 = vand.u32 %v205, 4294901760
        %373 = vmatmul.mubr.f32.gmra.mxu0 %v372
        %v374 = vpop.f32.mrf.mxu0
        %v375 = vadd.f32 %v284, %v374
        %v376 = vpop.f32.mrf.mxu0
        %377 = vmatprep.mubr.f32.mxu0 0.0
        %v378 = vand.u32 %v208, 4294901760
        %379 = vmatmul.mubr.f32.gmra.mxu0 %v378
        %v380 = vpop.f32.mrf.mxu0
        %v381 = vadd.f32 %v294, %v380
        %v382 = vpop.f32.mrf.mxu0
        %383 = vdwg.mxu0
        %384 = vmatprep.subr.mxu0 0.0
        %385 = vmatpush1.msra.mxu0 0.0
        %386 = vmatprep.subr.mxu0 0.0
        %387 = vmatpush1.msra.mxu0 0.0
        %388 = vmatprep.subr.mxu0 0.0
        %389 = vmatpush1.msra.mxu0 0.0
        %390 = vmatprep.subr.mxu0 0.0
        %391 = vmatpush1.msra.mxu0 0.0
        %392 = vmatprep.subr.mxu0 0.0
        %393 = vmatpush1.msra.mxu0 0.0
        %394 = vmatprep.subr.mxu0 0.0
        %395 = vmatpush1.msra.mxu0 0.0
        %396 = vmatprep.subr.mxu0 0.0
        %397 = vmatpush1.msra.mxu0 0.0
        %398 = vmatprep.subr.mxu0 0.0
        %399 = vmatpush1.msra.mxu0 0.0
        %400 = vmatprep.subr.mxu0 0.0
        %401 = vmatpush1.msra.mxu0 0.0
        %402 = vmatprep.subr.mxu0 0.0
        %403 = vmatpush1.msra.mxu0 0.0
        %404 = vmatprep.subr.mxu0 0.0
        %405 = vmatpush1.msra.mxu0 0.0
        %406 = vmatprep.subr.mxu0 0.0
        %407 = vmatpush1.msra.mxu0 0.0
        %408 = vmatprep.subr.mxu0 0.0
        %409 = vmatpush1.msra.mxu0 0.0
        %410 = vmatprep.subr.mxu0 0.0
        %411 = vmatpush1.msra.mxu0 0.0
        %412 = vmatprep.subr.mxu0 0.0
        %v413 = vand.u32 %v163, 4294901760
        %v414 = vsub.f32 %v163, %v413
        %415 = vmatpush1.msra.mxu0 %v414
        %416 = vmatprep.subr.mxu0 0.0
        %v417 = vand.u32 %v162, 4294901760
        %v418 = vsub.f32 %v162, %v417
        %419 = vmatpush1.msra.mxu0 %v418
        %420 = vmatprep.subr.mxu0 0.0
        %421 = vmatpush2.msra.mxu0 0.0
        %422 = vmatprep.subr.mxu0 0.0
        %423 = vmatpush2.msra.mxu0 0.0
        %424 = vmatprep.subr.mxu0 0.0
        %425 = vmatpush2.msra.mxu0 0.0
        %426 = vmatprep.subr.mxu0 0.0
        %427 = vmatpush2.msra.mxu0 0.0
        %428 = vmatprep.subr.mxu0 0.0
        %429 = vmatpush2.msra.mxu0 0.0
        %430 = vmatprep.subr.mxu0 0.0
        %431 = vmatpush2.msra.mxu0 0.0
        %432 = vmatprep.subr.mxu0 0.0
        %433 = vmatpush2.msra.mxu0 0.0
        %434 = vmatprep.subr.mxu0 0.0
        %435 = vmatpush2.msra.mxu0 0.0
        %436 = vmatprep.subr.mxu0 0.0
        %437 = vmatpush2.msra.mxu0 0.0
        %438 = vmatprep.subr.mxu0 0.0
        %439 = vmatpush2.msra.mxu0 0.0
        %440 = vmatprep.subr.mxu0 0.0
        %441 = vmatpush2.msra.mxu0 0.0
        %442 = vmatprep.subr.mxu0 0.0
        %443 = vmatpush2.msra.mxu0 0.0
        %444 = vmatprep.subr.mxu0 0.0
        %445 = vmatpush2.msra.mxu0 0.0
        %446 = vmatprep.subr.mxu0 0.0
        %447 = vmatpush2.msra.mxu0 0.0
        %448 = vmatprep.subr.mxu0 0.0
        %449 = vmatpush2.msra.mxu0 0.0
        %450 = vmatprep.subr.mxu0 0.0
        %451 = vmatpush2.msra.mxu0 0.0
        %452 = vmatprep.mubr.f32.mxu0 0.0
        %v453 = vand.u32 %v205, 4294901760
        %v454 = vsub.f32 %v205, %v453
        %455 = vmatmul.mubr.f32.gmra.mxu0 %v454
        %v456 = vpop.f32.mrf.mxu0
        %v457 = vadd.f32 %v375, %v456
        %v458 = vpop.f32.mrf.mxu0
        %459 = vmatprep.mubr.f32.mxu0 0.0
        %v460 = vand.u32 %v208, 4294901760
        %v461 = vsub.f32 %v208, %v460
        %462 = vmatmul.mubr.f32.gmra.mxu0 %v461
        %v463 = vpop.f32.mrf.mxu0
        %v464 = vadd.f32 %v381, %v463
        %v465 = vpop.f32.mrf.mxu0
        %466 = vdwg.mxu0
        %467 = vmatprep.subr.mxu0 0.0
        %468 = vmatpush1.msra.mxu0 0.0
        %469 = vmatprep.subr.mxu0 0.0
        %470 = vmatpush1.msra.mxu0 0.0
        %471 = vmatprep.subr.mxu0 0.0
        %472 = vmatpush1.msra.mxu0 0.0
        %473 = vmatprep.subr.mxu0 0.0
        %474 = vmatpush1.msra.mxu0 0.0
        %475 = vmatprep.subr.mxu0 0.0
        %476 = vmatpush1.msra.mxu0 0.0
        %477 = vmatprep.subr.mxu0 0.0
        %478 = vmatpush1.msra.mxu0 0.0
        %479 = vmatprep.subr.mxu0 0.0
        %480 = vmatpush1.msra.mxu0 0.0
        %481 = vmatprep.subr.mxu0 0.0
        %482 = vmatpush1.msra.mxu0 0.0
        %483 = vmatprep.subr.mxu0 0.0
        %484 = vmatpush1.msra.mxu0 0.0
        %485 = vmatprep.subr.mxu0 0.0
        %486 = vmatpush1.msra.mxu0 0.0
        %487 = vmatprep.subr.mxu0 0.0
        %488 = vmatpush1.msra.mxu0 0.0
        %489 = vmatprep.subr.mxu0 0.0
        %490 = vmatpush1.msra.mxu0 0.0
        %491 = vmatprep.subr.mxu0 0.0
        %492 = vmatpush1.msra.mxu0 0.0
        %493 = vmatprep.subr.mxu0 0.0
        %494 = vmatpush1.msra.mxu0 0.0
        %495 = vmatprep.subr.mxu0 0.0
        %v496 = vand.u32 %v163, 4294901760
        %497 = vmatpush1.msra.mxu0 %v496
        %498 = vmatprep.subr.mxu0 0.0
        %v499 = vand.u32 %v162, 4294901760
        %500 = vmatpush1.msra.mxu0 %v499
        %501 = vmatprep.subr.mxu0 0.0
        %502 = vmatpush2.msra.mxu0 0.0
        %503 = vmatprep.subr.mxu0 0.0
        %504 = vmatpush2.msra.mxu0 0.0
        %505 = vmatprep.subr.mxu0 0.0
        %506 = vmatpush2.msra.mxu0 0.0
        %507 = vmatprep.subr.mxu0 0.0
        %508 = vmatpush2.msra.mxu0 0.0
        %509 = vmatprep.subr.mxu0 0.0
        %510 = vmatpush2.msra.mxu0 0.0
        %511 = vmatprep.subr.mxu0 0.0
        %512 = vmatpush2.msra.mxu0 0.0
        %513 = vmatprep.subr.mxu0 0.0
        %514 = vmatpush2.msra.mxu0 0.0
        %515 = vmatprep.subr.mxu0 0.0
        %516 = vmatpush2.msra.mxu0 0.0
        %517 = vmatprep.subr.mxu0 0.0
        %518 = vmatpush2.msra.mxu0 0.0
        %519 = vmatprep.subr.mxu0 0.0
        %520 = vmatpush2.msra.mxu0 0.0
        %521 = vmatprep.subr.mxu0 0.0
        %522 = vmatpush2.msra.mxu0 0.0
        %523 = vmatprep.subr.mxu0 0.0
        %524 = vmatpush2.msra.mxu0 0.0
        %525 = vmatprep.subr.mxu0 0.0
        %526 = vmatpush2.msra.mxu0 0.0
        %527 = vmatprep.subr.mxu0 0.0
        %528 = vmatpush2.msra.mxu0 0.0
        %529 = vmatprep.subr.mxu0 0.0
        %530 = vmatpush2.msra.mxu0 0.0
        %531 = vmatprep.subr.mxu0 0.0
        %532 = vmatpush2.msra.mxu0 0.0
        %533 = vmatprep.mubr.f32.mxu0 0.0
        %v534 = vand.u32 %v205, 4294901760
        %v535 = vsub.f32 %v205, %v534
        %v536 = vand.u32 %v535, 4294901760
        %537 = vmatmul.mubr.f32.gmra.mxu0 %v536
        %v538 = vpop.f32.mrf.mxu0
        %v539 = vadd.f32 %v457, %v538
        %v540 = vpop.f32.mrf.mxu0
        %541 = vmatprep.mubr.f32.mxu0 0.0
        %v542 = vand.u32 %v208, 4294901760
        %v543 = vsub.f32 %v208, %v542
        %v544 = vand.u32 %v543, 4294901760
        %545 = vmatmul.mubr.f32.gmra.mxu0 %v544
        %v546 = vpop.f32.mrf.mxu0
        %v547 = vadd.f32 %v464, %v546
        %v548 = vpop.f32.mrf.mxu0
        %549 = vdwg.mxu0
        %550 = vmatprep.subr.mxu0 0.0
        %551 = vmatpush1.msra.mxu0 0.0
        %552 = vmatprep.subr.mxu0 0.0
        %553 = vmatpush1.msra.mxu0 0.0
        %554 = vmatprep.subr.mxu0 0.0
        %555 = vmatpush1.msra.mxu0 0.0
        %556 = vmatprep.subr.mxu0 0.0
        %557 = vmatpush1.msra.mxu0 0.0
        %558 = vmatprep.subr.mxu0 0.0
        %559 = vmatpush1.msra.mxu0 0.0
        %560 = vmatprep.subr.mxu0 0.0
        %561 = vmatpush1.msra.mxu0 0.0
        %562 = vmatprep.subr.mxu0 0.0
        %563 = vmatpush1.msra.mxu0 0.0
        %564 = vmatprep.subr.mxu0 0.0
        %565 = vmatpush1.msra.mxu0 0.0
        %566 = vmatprep.subr.mxu0 0.0
        %567 = vmatpush1.msra.mxu0 0.0
        %568 = vmatprep.subr.mxu0 0.0
        %569 = vmatpush1.msra.mxu0 0.0
        %570 = vmatprep.subr.mxu0 0.0
        %571 = vmatpush1.msra.mxu0 0.0
        %572 = vmatprep.subr.mxu0 0.0
        %573 = vmatpush1.msra.mxu0 0.0
        %574 = vmatprep.subr.mxu0 0.0
        %575 = vmatpush1.msra.mxu0 0.0
        %576 = vmatprep.subr.mxu0 0.0
        %577 = vmatpush1.msra.mxu0 0.0
        %578 = vmatprep.subr.mxu0 0.0
        %v579 = vand.u32 %v163, 4294901760
        %v580 = vsub.f32 %v163, %v579
        %v581 = vand.u32 %v580, 4294901760
        %582 = vmatpush1.msra.mxu0 %v581
        %583 = vmatprep.subr.mxu0 0.0
        %v584 = vand.u32 %v162, 4294901760
        %v585 = vsub.f32 %v162, %v584
        %v586 = vand.u32 %v585, 4294901760
        %587 = vmatpush1.msra.mxu0 %v586
        %588 = vmatprep.subr.mxu0 0.0
        %589 = vmatpush2.msra.mxu0 0.0
        %590 = vmatprep.subr.mxu0 0.0
        %591 = vmatpush2.msra.mxu0 0.0
        %592 = vmatprep.subr.mxu0 0.0
        %593 = vmatpush2.msra.mxu0 0.0
        %594 = vmatprep.subr.mxu0 0.0
        %595 = vmatpush2.msra.mxu0 0.0
        %596 = vmatprep.subr.mxu0 0.0
        %597 = vmatpush2.msra.mxu0 0.0
        %598 = vmatprep.subr.mxu0 0.0
        %599 = vmatpush2.msra.mxu0 0.0
        %600 = vmatprep.subr.mxu0 0.0
        %601 = vmatpush2.msra.mxu0 0.0
        %602 = vmatprep.subr.mxu0 0.0
        %603 = vmatpush2.msra.mxu0 0.0
        %604 = vmatprep.subr.mxu0 0.0
        %605 = vmatpush2.msra.mxu0 0.0
        %606 = vmatprep.subr.mxu0 0.0
        %607 = vmatpush2.msra.mxu0 0.0
        %608 = vmatprep.subr.mxu0 0.0
        %609 = vmatpush2.msra.mxu0 0.0
        %610 = vmatprep.subr.mxu0 0.0
        %611 = vmatpush2.msra.mxu0 0.0
        %612 = vmatprep.subr.mxu0 0.0
        %613 = vmatpush2.msra.mxu0 0.0
        %614 = vmatprep.subr.mxu0 0.0
        %615 = vmatpush2.msra.mxu0 0.0
        %616 = vmatprep.subr.mxu0 0.0
        %617 = vmatpush2.msra.mxu0 0.0
        %618 = vmatprep.subr.mxu0 0.0
        %619 = vmatpush2.msra.mxu0 0.0
        %620 = vmatprep.mubr.f32.mxu0 0.0
        %v621 = vand.u32 %v205, 4294901760
        %622 = vmatmul.mubr.f32.gmra.mxu0 %v621
        %v623 = vpop.f32.mrf.mxu0
        %v624 = vadd.f32 %v539, %v623
        %v625 = vpop.f32.mrf.mxu0
        %626 = vmatprep.mubr.f32.mxu0 0.0
        %v627 = vand.u32 %v208, 4294901760
        %628 = vmatmul.mubr.f32.gmra.mxu0 %v627
        %v629 = vpop.f32.mrf.mxu0
        %v630 = vadd.f32 %v547, %v629
        %v631 = vpop.f32.mrf.mxu0
        %632 = vdwg.mxu0
        %633 = vmatprep.subr.mxu0 0.0
        %634 = vmatpush1.msra.mxu0 0.0
        %635 = vmatprep.subr.mxu0 0.0
        %636 = vmatpush1.msra.mxu0 0.0
        %637 = vmatprep.subr.mxu0 0.0
        %638 = vmatpush1.msra.mxu0 0.0
        %639 = vmatprep.subr.mxu0 0.0
        %640 = vmatpush1.msra.mxu0 0.0
        %641 = vmatprep.subr.mxu0 0.0
        %642 = vmatpush1.msra.mxu0 0.0
        %643 = vmatprep.subr.mxu0 0.0
        %644 = vmatpush1.msra.mxu0 0.0
        %645 = vmatprep.subr.mxu0 0.0
        %646 = vmatpush1.msra.mxu0 0.0
        %647 = vmatprep.subr.mxu0 0.0
        %648 = vmatpush1.msra.mxu0 0.0
        %649 = vmatprep.subr.mxu0 0.0
        %650 = vmatpush1.msra.mxu0 0.0
        %651 = vmatprep.subr.mxu0 0.0
        %652 = vmatpush1.msra.mxu0 0.0
        %653 = vmatprep.subr.mxu0 0.0
        %654 = vmatpush1.msra.mxu0 0.0
        %655 = vmatprep.subr.mxu0 0.0
        %656 = vmatpush1.msra.mxu0 0.0
        %657 = vmatprep.subr.mxu0 0.0
        %658 = vmatpush1.msra.mxu0 0.0
        %659 = vmatprep.subr.mxu0 0.0
        %660 = vmatpush1.msra.mxu0 0.0
        %661 = vmatprep.subr.mxu0 0.0
        %v662 = vand.u32 %v163, 4294901760
        %663 = vmatpush1.msra.mxu0 %v662
        %664 = vmatprep.subr.mxu0 0.0
        %v665 = vand.u32 %v162, 4294901760
        %666 = vmatpush1.msra.mxu0 %v665
        %667 = vmatprep.subr.mxu0 0.0
        %668 = vmatpush2.msra.mxu0 0.0
        %669 = vmatprep.subr.mxu0 0.0
        %670 = vmatpush2.msra.mxu0 0.0
        %671 = vmatprep.subr.mxu0 0.0
        %672 = vmatpush2.msra.mxu0 0.0
        %673 = vmatprep.subr.mxu0 0.0
        %674 = vmatpush2.msra.mxu0 0.0
        %675 = vmatprep.subr.mxu0 0.0
        %676 = vmatpush2.msra.mxu0 0.0
        %677 = vmatprep.subr.mxu0 0.0
        %678 = vmatpush2.msra.mxu0 0.0
        %679 = vmatprep.subr.mxu0 0.0
        %680 = vmatpush2.msra.mxu0 0.0
        %681 = vmatprep.subr.mxu0 0.0
        %682 = vmatpush2.msra.mxu0 0.0
        %683 = vmatprep.subr.mxu0 0.0
        %684 = vmatpush2.msra.mxu0 0.0
        %685 = vmatprep.subr.mxu0 0.0
        %686 = vmatpush2.msra.mxu0 0.0
        %687 = vmatprep.subr.mxu0 0.0
        %688 = vmatpush2.msra.mxu0 0.0
        %689 = vmatprep.subr.mxu0 0.0
        %690 = vmatpush2.msra.mxu0 0.0
        %691 = vmatprep.subr.mxu0 0.0
        %692 = vmatpush2.msra.mxu0 0.0
        %693 = vmatprep.subr.mxu0 0.0
        %694 = vmatpush2.msra.mxu0 0.0
        %695 = vmatprep.subr.mxu0 0.0
        %696 = vmatpush2.msra.mxu0 0.0
        %697 = vmatprep.subr.mxu0 0.0
        %698 = vmatpush2.msra.mxu0 0.0
        %699 = vmatprep.mubr.f32.mxu0 0.0
        %v700 = vand.u32 %v205, 4294901760
        %701 = vmatmul.mubr.f32.gmra.mxu0 %v700
        %v702 = vpop.f32.mrf.mxu0
        %v703 = vadd.f32 %v624, %v702
        %v704 = vpop.f32.mrf.mxu0
        %705 = vmatprep.mubr.f32.mxu0 0.0
        %v706 = vand.u32 %v208, 4294901760
        %707 = vmatmul.mubr.f32.gmra.mxu0 %v706
        %v708 = vpop.f32.mrf.mxu0
        %v709 = vadd.f32 %v630, %v708
        %v710 = vpop.f32.mrf.mxu0
        %711 = vdwg.mxu0
        %v712 = vmax.f32 %v703, 0.0
        %v713 = vmax.f32 %v709, 0.0
        %v714 = vlaneseq
        %v715 = vshrl.u32 %v714, 7
        %v716 = vsub.s32 0, %v715
        %v717 = vrot.slane %v181, %v716
        %718 = vmatprep.subr.mxu0 0.0
        %v719 = vand.u32 %v180, 4294901760
        %720 = vmatpush1.msra.mxu0 %v719
        %721 = vmatprep.subr.mxu0 0.0
        %v722 = vand.u32 %v179, 4294901760
        %723 = vmatpush1.msra.mxu0 %v722
        %724 = vmatprep.subr.mxu0 0.0
        %v725 = vand.u32 %v178, 4294901760
        %726 = vmatpush1.msra.mxu0 %v725
        %727 = vmatprep.subr.mxu0 0.0
        %v728 = vand.u32 %v177, 4294901760
        %729 = vmatpush1.msra.mxu0 %v728
        %730 = vmatprep.subr.mxu0 0.0
        %v731 = vand.u32 %v176, 4294901760
        %732 = vmatpush1.msra.mxu0 %v731
        %733 = vmatprep.subr.mxu0 0.0
        %v734 = vand.u32 %v175, 4294901760
        %735 = vmatpush1.msra.mxu0 %v734
        %736 = vmatprep.subr.mxu0 0.0
        %v737 = vand.u32 %v174, 4294901760
        %738 = vmatpush1.msra.mxu0 %v737
        %739 = vmatprep.subr.mxu0 0.0
        %v740 = vand.u32 %v173, 4294901760
        %741 = vmatpush1.msra.mxu0 %v740
        %742 = vmatprep.subr.mxu0 0.0
        %v743 = vand.u32 %v172, 4294901760
        %744 = vmatpush1.msra.mxu0 %v743
        %745 = vmatprep.subr.mxu0 0.0
        %v746 = vand.u32 %v171, 4294901760
        %747 = vmatpush1.msra.mxu0 %v746
        %748 = vmatprep.subr.mxu0 0.0
        %v749 = vand.u32 %v170, 4294901760
        %750 = vmatpush1.msra.mxu0 %v749
        %751 = vmatprep.subr.mxu0 0.0
        %v752 = vand.u32 %v169, 4294901760
        %753 = vmatpush1.msra.mxu0 %v752
        %754 = vmatprep.subr.mxu0 0.0
        %v755 = vand.u32 %v168, 4294901760
        %756 = vmatpush1.msra.mxu0 %v755
        %757 = vmatprep.subr.mxu0 0.0
        %v758 = vand.u32 %v167, 4294901760
        %759 = vmatpush1.msra.mxu0 %v758
        %760 = vmatprep.subr.mxu0 0.0
        %v761 = vand.u32 %v166, 4294901760
        %762 = vmatpush1.msra.mxu0 %v761
        %763 = vmatprep.subr.mxu0 0.0
        %v764 = vand.u32 %v165, 4294901760
        %765 = vmatpush1.msra.mxu0 %v764
        %766 = vmatprep.subr.mxu0 0.0
        %767 = vmatpush2.msra.mxu0 0.0
        %768 = vmatprep.subr.mxu0 0.0
        %769 = vmatpush2.msra.mxu0 0.0
        %770 = vmatprep.subr.mxu0 0.0
        %771 = vmatpush2.msra.mxu0 0.0
        %772 = vmatprep.subr.mxu0 0.0
        %773 = vmatpush2.msra.mxu0 0.0
        %774 = vmatprep.subr.mxu0 0.0
        %775 = vmatpush2.msra.mxu0 0.0
        %776 = vmatprep.subr.mxu0 0.0
        %777 = vmatpush2.msra.mxu0 0.0
        %778 = vmatprep.subr.mxu0 0.0
        %779 = vmatpush2.msra.mxu0 0.0
        %780 = vmatprep.subr.mxu0 0.0
        %781 = vmatpush2.msra.mxu0 0.0
        %782 = vmatprep.subr.mxu0 0.0
        %783 = vmatpush2.msra.mxu0 0.0
        %784 = vmatprep.subr.mxu0 0.0
        %785 = vmatpush2.msra.mxu0 0.0
        %786 = vmatprep.subr.mxu0 0.0
        %787 = vmatpush2.msra.mxu0 0.0
        %788 = vmatprep.subr.mxu0 0.0
        %789 = vmatpush2.msra.mxu0 0.0
        %790 = vmatprep.subr.mxu0 0.0
        %791 = vmatpush2.msra.mxu0 0.0
        %792 = vmatprep.subr.mxu0 0.0
        %793 = vmatpush2.msra.mxu0 0.0
        %794 = vmatprep.subr.mxu0 0.0
        %795 = vmatpush2.msra.mxu0 0.0
        %796 = vmatprep.subr.mxu0 0.0
        %797 = vmatpush2.msra.mxu0 0.0
        %798 = vmatprep.mubr.f32.mxu0 0.0
        %v799 = vand.u32 %v712, 4294901760
        %v800 = vsub.f32 %v712, %v799
        %v801 = vand.u32 %v800, 4294901760
        %v802 = vsub.f32 %v800, %v801
        %v803 = vand.u32 %v802, 4294901760
        %804 = vmatmul.mubr.f32.gmra.mxu0 %v803
        %v805 = vpop.f32.mrf.mxu0
        %v806 = vadd.f32 %v717, %v805
        %v807 = vpop.f32.mrf.mxu0
        %808 = vmatprep.mubr.f32.mxu0 0.0
        %v809 = vand.u32 %v713, 4294901760
        %v810 = vsub.f32 %v713, %v809
        %v811 = vand.u32 %v810, 4294901760
        %v812 = vsub.f32 %v810, %v811
        %v813 = vand.u32 %v812, 4294901760
        %814 = vmatmul.mubr.f32.gmra.mxu0 %v813
        %v815 = vpop.f32.mrf.mxu0
        %v816 = vadd.f32 %v717, %v815
        %v817 = vpop.f32.mrf.mxu0
        %818 = vdwg.mxu0
        %819 = vmatprep.subr.mxu0 0.0
        %v820 = vand.u32 %v180, 4294901760
        %v821 = vsub.f32 %v180, %v820
        %v822 = vand.u32 %v821, 4294901760
        %v823 = vsub.f32 %v821, %v822
        %v824 = vand.u32 %v823, 4294901760
        %825 = vmatpush1.msra.mxu0 %v824
        %826 = vmatprep.subr.mxu0 0.0
        %v827 = vand.u32 %v179, 4294901760
        %v828 = vsub.f32 %v179, %v827
        %v829 = vand.u32 %v828, 4294901760
        %v830 = vsub.f32 %v828, %v829
        %v831 = vand.u32 %v830, 4294901760
        %832 = vmatpush1.msra.mxu0 %v831
        %833 = vmatprep.subr.mxu0 0.0
        %v834 = vand.u32 %v178, 4294901760
        %v835 = vsub.f32 %v178, %v834
        %v836 = vand.u32 %v835, 4294901760
        %v837 = vsub.f32 %v835, %v836
        %v838 = vand.u32 %v837, 4294901760
        %839 = vmatpush1.msra.mxu0 %v838
        %840 = vmatprep.subr.mxu0 0.0
        %v841 = vand.u32 %v177, 4294901760
        %v842 = vsub.f32 %v177, %v841
        %v843 = vand.u32 %v842, 4294901760
        %v844 = vsub.f32 %v842, %v843
        %v845 = vand.u32 %v844, 4294901760
        %846 = vmatpush1.msra.mxu0 %v845
        %847 = vmatprep.subr.mxu0 0.0
        %v848 = vand.u32 %v176, 4294901760
        %v849 = vsub.f32 %v176, %v848
        %v850 = vand.u32 %v849, 4294901760
        %v851 = vsub.f32 %v849, %v850
        %v852 = vand.u32 %v851, 4294901760
        %853 = vmatpush1.msra.mxu0 %v852
        %854 = vmatprep.subr.mxu0 0.0
        %v855 = vand.u32 %v175, 4294901760
        %v856 = vsub.f32 %v175, %v855
        %v857 = vand.u32 %v856, 4294901760
        %v858 = vsub.f32 %v856, %v857
        %v859 = vand.u32 %v858, 4294901760
        %860 = vmatpush1.msra.mxu0 %v859
        %861 = vmatprep.subr.mxu0 0.0
        %v862 = vand.u32 %v174, 4294901760
        %v863 = vsub.f32 %v174, %v862
        %v864 = vand.u32 %v863, 4294901760
        %v865 = vsub.f32 %v863, %v864
        %v866 = vand.u32 %v865, 4294901760
        %867 = vmatpush1.msra.mxu0 %v866
        %868 = vmatprep.subr.mxu0 0.0
        %v869 = vand.u32 %v173, 4294901760
        %v870 = vsub.f32 %v173, %v869
        %v871 = vand.u32 %v870, 4294901760
        %v872 = vsub.f32 %v870, %v871
        %v873 = vand.u32 %v872, 4294901760
        %874 = vmatpush1.msra.mxu0 %v873
        %875 = vmatprep.subr.mxu0 0.0
        %v876 = vand.u32 %v172, 4294901760
        %v877 = vsub.f32 %v172, %v876
        %v878 = vand.u32 %v877, 4294901760
        %v879 = vsub.f32 %v877, %v878
        %v880 = vand.u32 %v879, 4294901760
        %881 = vmatpush1.msra.mxu0 %v880
        %882 = vmatprep.subr.mxu0 0.0
        %v883 = vand.u32 %v171, 4294901760
        %v884 = vsub.f32 %v171, %v883
        %v885 = vand.u32 %v884, 4294901760
        %v886 = vsub.f32 %v884, %v885
        %v887 = vand.u32 %v886, 4294901760
        %888 = vmatpush1.msra.mxu0 %v887
        %889 = vmatprep.subr.mxu0 0.0
        %v890 = vand.u32 %v170, 4294901760
        %v891 = vsub.f32 %v170, %v890
        %v892 = vand.u32 %v891, 4294901760
        %v893 = vsub.f32 %v891, %v892
        %v894 = vand.u32 %v893, 4294901760
        %895 = vmatpush1.msra.mxu0 %v894
        %896 = vmatprep.subr.mxu0 0.0
        %v897 = vand.u32 %v169, 4294901760
        %v898 = vsub.f32 %v169, %v897
        %v899 = vand.u32 %v898, 4294901760
        %v900 = vsub.f32 %v898, %v899
        %v901 = vand.u32 %v900, 4294901760
        %902 = vmatpush1.msra.mxu0 %v901
        %903 = vmatprep.subr.mxu0 0.0
        %v904 = vand.u32 %v168, 4294901760
        %v905 = vsub.f32 %v168, %v904
        %v906 = vand.u32 %v905, 4294901760
        %v907 = vsub.f32 %v905, %v906
        %v908 = vand.u32 %v907, 4294901760
        %909 = vmatpush1.msra.mxu0 %v908
        %910 = vmatprep.subr.mxu0 0.0
        %v911 = vand.u32 %v167, 4294901760
        %v912 = vsub.f32 %v167, %v911
        %v913 = vand.u32 %v912, 4294901760
        %v914 = vsub.f32 %v912, %v913
        %v915 = vand.u32 %v914, 4294901760
        %916 = vmatpush1.msra.mxu0 %v915
        %917 = vmatprep.subr.mxu0 0.0
        %v918 = vand.u32 %v166, 4294901760
        %v919 = vsub.f32 %v166, %v918
        %v920 = vand.u32 %v919, 4294901760
        %v921 = vsub.f32 %v919, %v920
        %v922 = vand.u32 %v921, 4294901760
        %923 = vmatpush1.msra.mxu0 %v922
        %924 = vmatprep.subr.mxu0 0.0
        %v925 = vand.u32 %v165, 4294901760
        %v926 = vsub.f32 %v165, %v925
        %v927 = vand.u32 %v926, 4294901760
        %v928 = vsub.f32 %v926, %v927
        %v929 = vand.u32 %v928, 4294901760
        %930 = vmatpush1.msra.mxu0 %v929
        %931 = vmatprep.subr.mxu0 0.0
        %932 = vmatpush2.msra.mxu0 0.0
        %933 = vmatprep.subr.mxu0 0.0
        %934 = vmatpush2.msra.mxu0 0.0
        %935 = vmatprep.subr.mxu0 0.0
        %936 = vmatpush2.msra.mxu0 0.0
        %937 = vmatprep.subr.mxu0 0.0
        %938 = vmatpush2.msra.mxu0 0.0
        %939 = vmatprep.subr.mxu0 0.0
        %940 = vmatpush2.msra.mxu0 0.0
        %941 = vmatprep.subr.mxu0 0.0
        %942 = vmatpush2.msra.mxu0 0.0
        %943 = vmatprep.subr.mxu0 0.0
        %944 = vmatpush2.msra.mxu0 0.0
        %945 = vmatprep.subr.mxu0 0.0
        %946 = vmatpush2.msra.mxu0 0.0
        %947 = vmatprep.subr.mxu0 0.0
        %948 = vmatpush2.msra.mxu0 0.0
        %949 = vmatprep.subr.mxu0 0.0
        %950 = vmatpush2.msra.mxu0 0.0
        %951 = vmatprep.subr.mxu0 0.0
        %952 = vmatpush2.msra.mxu0 0.0
        %953 = vmatprep.subr.mxu0 0.0
        %954 = vmatpush2.msra.mxu0 0.0
        %955 = vmatprep.subr.mxu0 0.0
        %956 = vmatpush2.msra.mxu0 0.0
        %957 = vmatprep.subr.mxu0 0.0
        %958 = vmatpush2.msra.mxu0 0.0
        %959 = vmatprep.subr.mxu0 0.0
        %960 = vmatpush2.msra.mxu0 0.0
        %961 = vmatprep.subr.mxu0 0.0
        %962 = vmatpush2.msra.mxu0 0.0
        %963 = vmatprep.mubr.f32.mxu0 0.0
        %v964 = vand.u32 %v712, 4294901760
        %965 = vmatmul.mubr.f32.gmra.mxu0 %v964
        %v966 = vpop.f32.mrf.mxu0
        %v967 = vadd.f32 %v806, %v966
        %v968 = vpop.f32.mrf.mxu0
        %969 = vmatprep.mubr.f32.mxu0 0.0
        %v970 = vand.u32 %v713, 4294901760
        %971 = vmatmul.mubr.f32.gmra.mxu0 %v970
        %v972 = vpop.f32.mrf.mxu0
        %v973 = vadd.f32 %v816, %v972
        %v974 = vpop.f32.mrf.mxu0
        %975 = vdwg.mxu0
        %976 = vmatprep.subr.mxu0 0.0
        %v977 = vand.u32 %v180, 4294901760
        %v978 = vsub.f32 %v180, %v977
        %979 = vmatpush1.msra.mxu0 %v978
        %980 = vmatprep.subr.mxu0 0.0
        %v981 = vand.u32 %v179, 4294901760
        %v982 = vsub.f32 %v179, %v981
        %983 = vmatpush1.msra.mxu0 %v982
        %984 = vmatprep.subr.mxu0 0.0
        %v985 = vand.u32 %v178, 4294901760
        %v986 = vsub.f32 %v178, %v985
        %987 = vmatpush1.msra.mxu0 %v986
        %988 = vmatprep.subr.mxu0 0.0
        %v989 = vand.u32 %v177, 4294901760
        %v990 = vsub.f32 %v177, %v989
        %991 = vmatpush1.msra.mxu0 %v990
        %992 = vmatprep.subr.mxu0 0.0
        %v993 = vand.u32 %v176, 4294901760
        %v994 = vsub.f32 %v176, %v993
        %995 = vmatpush1.msra.mxu0 %v994
        %996 = vmatprep.subr.mxu0 0.0
        %v997 = vand.u32 %v175, 4294901760
        %v998 = vsub.f32 %v175, %v997
        %999 = vmatpush1.msra.mxu0 %v998
        %1000 = vmatprep.subr.mxu0 0.0
        %v1001 = vand.u32 %v174, 4294901760
        %v1002 = vsub.f32 %v174, %v1001
        %1003 = vmatpush1.msra.mxu0 %v1002
        %1004 = vmatprep.subr.mxu0 0.0
        %v1005 = vand.u32 %v173, 4294901760
        %v1006 = vsub.f32 %v173, %v1005
        %1007 = vmatpush1.msra.mxu0 %v1006
        %1008 = vmatprep.subr.mxu0 0.0
        %v1009 = vand.u32 %v172, 4294901760
        %v1010 = vsub.f32 %v172, %v1009
        %1011 = vmatpush1.msra.mxu0 %v1010
        %1012 = vmatprep.subr.mxu0 0.0
        %v1013 = vand.u32 %v171, 4294901760
        %v1014 = vsub.f32 %v171, %v1013
        %1015 = vmatpush1.msra.mxu0 %v1014
        %1016 = vmatprep.subr.mxu0 0.0
        %v1017 = vand.u32 %v170, 4294901760
        %v1018 = vsub.f32 %v170, %v1017
        %1019 = vmatpush1.msra.mxu0 %v1018
        %1020 = vmatprep.subr.mxu0 0.0
        %v1021 = vand.u32 %v169, 4294901760
        %v1022 = vsub.f32 %v169, %v1021
        %1023 = vmatpush1.msra.mxu0 %v1022
        %1024 = vmatprep.subr.mxu0 0.0
        %v1025 = vand.u32 %v168, 4294901760
        %v1026 = vsub.f32 %v168, %v1025
        %1027 = vmatpush1.msra.mxu0 %v1026
        %1028 = vmatprep.subr.mxu0 0.0
        %v1029 = vand.u32 %v167, 4294901760
        %v1030 = vsub.f32 %v167, %v1029
        %1031 = vmatpush1.msra.mxu0 %v1030
        %1032 = vmatprep.subr.mxu0 0.0
        %v1033 = vand.u32 %v166, 4294901760
        %v1034 = vsub.f32 %v166, %v1033
        %1035 = vmatpush1.msra.mxu0 %v1034
        %1036 = vmatprep.subr.mxu0 0.0
        %v1037 = vand.u32 %v165, 4294901760
        %v1038 = vsub.f32 %v165, %v1037
        %1039 = vmatpush1.msra.mxu0 %v1038
        %1040 = vmatprep.subr.mxu0 0.0
        %1041 = vmatpush2.msra.mxu0 0.0
        %1042 = vmatprep.subr.mxu0 0.0
        %1043 = vmatpush2.msra.mxu0 0.0
        %1044 = vmatprep.subr.mxu0 0.0
        %1045 = vmatpush2.msra.mxu0 0.0
        %1046 = vmatprep.subr.mxu0 0.0
        %1047 = vmatpush2.msra.mxu0 0.0
        %1048 = vmatprep.subr.mxu0 0.0
        %1049 = vmatpush2.msra.mxu0 0.0
        %1050 = vmatprep.subr.mxu0 0.0
        %1051 = vmatpush2.msra.mxu0 0.0
        %1052 = vmatprep.subr.mxu0 0.0
        %1053 = vmatpush2.msra.mxu0 0.0
        %1054 = vmatprep.subr.mxu0 0.0
        %1055 = vmatpush2.msra.mxu0 0.0
        %1056 = vmatprep.subr.mxu0 0.0
        %1057 = vmatpush2.msra.mxu0 0.0
        %1058 = vmatprep.subr.mxu0 0.0
        %1059 = vmatpush2.msra.mxu0 0.0
        %1060 = vmatprep.subr.mxu0 0.0
        %1061 = vmatpush2.msra.mxu0 0.0
        %1062 = vmatprep.subr.mxu0 0.0
        %1063 = vmatpush2.msra.mxu0 0.0
        %1064 = vmatprep.subr.mxu0 0.0
        %1065 = vmatpush2.msra.mxu0 0.0
        %1066 = vmatprep.subr.mxu0 0.0
        %1067 = vmatpush2.msra.mxu0 0.0
        %1068 = vmatprep.subr.mxu0 0.0
        %1069 = vmatpush2.msra.mxu0 0.0
        %1070 = vmatprep.subr.mxu0 0.0
        %1071 = vmatpush2.msra.mxu0 0.0
        %1072 = vmatprep.mubr.f32.mxu0 0.0
        %v1073 = vand.u32 %v712, 4294901760
        %v1074 = vsub.f32 %v712, %v1073
        %1075 = vmatmul.mubr.f32.gmra.mxu0 %v1074
        %v1076 = vpop.f32.mrf.mxu0
        %v1077 = vadd.f32 %v967, %v1076
        %v1078 = vpop.f32.mrf.mxu0
        %1079 = vmatprep.mubr.f32.mxu0 0.0
        %v1080 = vand.u32 %v713, 4294901760
        %v1081 = vsub.f32 %v713, %v1080
        %1082 = vmatmul.mubr.f32.gmra.mxu0 %v1081
        %v1083 = vpop.f32.mrf.mxu0
        %v1084 = vadd.f32 %v973, %v1083
        %v1085 = vpop.f32.mrf.mxu0
        %1086 = vdwg.mxu0
        %1087 = vmatprep.subr.mxu0 0.0
        %v1088 = vand.u32 %v180, 4294901760
        %1089 = vmatpush1.msra.mxu0 %v1088
        %1090 = vmatprep.subr.mxu0 0.0
        %v1091 = vand.u32 %v179, 4294901760
        %1092 = vmatpush1.msra.mxu0 %v1091
        %1093 = vmatprep.subr.mxu0 0.0
        %v1094 = vand.u32 %v178, 4294901760
        %1095 = vmatpush1.msra.mxu0 %v1094
        %1096 = vmatprep.subr.mxu0 0.0
        %v1097 = vand.u32 %v177, 4294901760
        %1098 = vmatpush1.msra.mxu0 %v1097
        %1099 = vmatprep.subr.mxu0 0.0
        %v1100 = vand.u32 %v176, 4294901760
        %1101 = vmatpush1.msra.mxu0 %v1100
        %1102 = vmatprep.subr.mxu0 0.0
        %v1103 = vand.u32 %v175, 4294901760
        %1104 = vmatpush1.msra.mxu0 %v1103
        %1105 = vmatprep.subr.mxu0 0.0
        %v1106 = vand.u32 %v174, 4294901760
        %1107 = vmatpush1.msra.mxu0 %v1106
        %1108 = vmatprep.subr.mxu0 0.0
        %v1109 = vand.u32 %v173, 4294901760
        %1110 = vmatpush1.msra.mxu0 %v1109
        %1111 = vmatprep.subr.mxu0 0.0
        %v1112 = vand.u32 %v172, 4294901760
        %1113 = vmatpush1.msra.mxu0 %v1112
        %1114 = vmatprep.subr.mxu0 0.0
        %v1115 = vand.u32 %v171, 4294901760
        %1116 = vmatpush1.msra.mxu0 %v1115
        %1117 = vmatprep.subr.mxu0 0.0
        %v1118 = vand.u32 %v170, 4294901760
        %1119 = vmatpush1.msra.mxu0 %v1118
        %1120 = vmatprep.subr.mxu0 0.0
        %v1121 = vand.u32 %v169, 4294901760
        %1122 = vmatpush1.msra.mxu0 %v1121
        %1123 = vmatprep.subr.mxu0 0.0
        %v1124 = vand.u32 %v168, 4294901760
        %1125 = vmatpush1.msra.mxu0 %v1124
        %1126 = vmatprep.subr.mxu0 0.0
        %v1127 = vand.u32 %v167, 4294901760
        %1128 = vmatpush1.msra.mxu0 %v1127
        %1129 = vmatprep.subr.mxu0 0.0
        %v1130 = vand.u32 %v166, 4294901760
        %1131 = vmatpush1.msra.mxu0 %v1130
        %1132 = vmatprep.subr.mxu0 0.0
        %v1133 = vand.u32 %v165, 4294901760
        %1134 = vmatpush1.msra.mxu0 %v1133
        %1135 = vmatprep.subr.mxu0 0.0
        %1136 = vmatpush2.msra.mxu0 0.0
        %1137 = vmatprep.subr.mxu0 0.0
        %1138 = vmatpush2.msra.mxu0 0.0
        %1139 = vmatprep.subr.mxu0 0.0
        %1140 = vmatpush2.msra.mxu0 0.0
        %1141 = vmatprep.subr.mxu0 0.0
        %1142 = vmatpush2.msra.mxu0 0.0
        %1143 = vmatprep.subr.mxu0 0.0
        %1144 = vmatpush2.msra.mxu0 0.0
        %1145 = vmatprep.subr.mxu0 0.0
        %1146 = vmatpush2.msra.mxu0 0.0
        %1147 = vmatprep.subr.mxu0 0.0
        %1148 = vmatpush2.msra.mxu0 0.0
        %1149 = vmatprep.subr.mxu0 0.0
        %1150 = vmatpush2.msra.mxu0 0.0
        %1151 = vmatprep.subr.mxu0 0.0
        %1152 = vmatpush2.msra.mxu0 0.0
        %1153 = vmatprep.subr.mxu0 0.0
        %1154 = vmatpush2.msra.mxu0 0.0
        %1155 = vmatprep.subr.mxu0 0.0
        %1156 = vmatpush2.msra.mxu0 0.0
        %1157 = vmatprep.subr.mxu0 0.0
        %1158 = vmatpush2.msra.mxu0 0.0
        %1159 = vmatprep.subr.mxu0 0.0
        %1160 = vmatpush2.msra.mxu0 0.0
        %1161 = vmatprep.subr.mxu0 0.0
        %1162 = vmatpush2.msra.mxu0 0.0
        %1163 = vmatprep.subr.mxu0 0.0
        %1164 = vmatpush2.msra.mxu0 0.0
        %1165 = vmatprep.subr.mxu0 0.0
        %1166 = vmatpush2.msra.mxu0 0.0
        %1167 = vmatprep.mubr.f32.mxu0 0.0
        %v1168 = vand.u32 %v712, 4294901760
        %v1169 = vsub.f32 %v712, %v1168
        %v1170 = vand.u32 %v1169, 4294901760
        %1171 = vmatmul.mubr.f32.gmra.mxu0 %v1170
        %v1172 = vpop.f32.mrf.mxu0
        %v1173 = vadd.f32 %v1077, %v1172
        %v1174 = vpop.f32.mrf.mxu0
        %1175 = vmatprep.mubr.f32.mxu0 0.0
        %v1176 = vand.u32 %v713, 4294901760
        %v1177 = vsub.f32 %v713, %v1176
        %v1178 = vand.u32 %v1177, 4294901760
        %1179 = vmatmul.mubr.f32.gmra.mxu0 %v1178
        %v1180 = vpop.f32.mrf.mxu0
        %v1181 = vadd.f32 %v1084, %v1180
        %v1182 = vpop.f32.mrf.mxu0
        %1183 = vdwg.mxu0
        %1184 = vmatprep.subr.mxu0 0.0
        %v1185 = vand.u32 %v180, 4294901760
        %v1186 = vsub.f32 %v180, %v1185
        %v1187 = vand.u32 %v1186, 4294901760
        %1188 = vmatpush1.msra.mxu0 %v1187
        %1189 = vmatprep.subr.mxu0 0.0
        %v1190 = vand.u32 %v179, 4294901760
        %v1191 = vsub.f32 %v179, %v1190
        %v1192 = vand.u32 %v1191, 4294901760
        %1193 = vmatpush1.msra.mxu0 %v1192
        %1194 = vmatprep.subr.mxu0 0.0
        %v1195 = vand.u32 %v178, 4294901760
        %v1196 = vsub.f32 %v178, %v1195
        %v1197 = vand.u32 %v1196, 4294901760
        %1198 = vmatpush1.msra.mxu0 %v1197
        %1199 = vmatprep.subr.mxu0 0.0
        %v1200 = vand.u32 %v177, 4294901760
        %v1201 = vsub.f32 %v177, %v1200
        %v1202 = vand.u32 %v1201, 4294901760
        %1203 = vmatpush1.msra.mxu0 %v1202
        %1204 = vmatprep.subr.mxu0 0.0
        %v1205 = vand.u32 %v176, 4294901760
        %v1206 = vsub.f32 %v176, %v1205
        %v1207 = vand.u32 %v1206, 4294901760
        %1208 = vmatpush1.msra.mxu0 %v1207
        %1209 = vmatprep.subr.mxu0 0.0
        %v1210 = vand.u32 %v175, 4294901760
        %v1211 = vsub.f32 %v175, %v1210
        %v1212 = vand.u32 %v1211, 4294901760
        %1213 = vmatpush1.msra.mxu0 %v1212
        %1214 = vmatprep.subr.mxu0 0.0
        %v1215 = vand.u32 %v174, 4294901760
        %v1216 = vsub.f32 %v174, %v1215
        %v1217 = vand.u32 %v1216, 4294901760
        %1218 = vmatpush1.msra.mxu0 %v1217
        %1219 = vmatprep.subr.mxu0 0.0
        %v1220 = vand.u32 %v173, 4294901760
        %v1221 = vsub.f32 %v173, %v1220
        %v1222 = vand.u32 %v1221, 4294901760
        %1223 = vmatpush1.msra.mxu0 %v1222
        %1224 = vmatprep.subr.mxu0 0.0
        %v1225 = vand.u32 %v172, 4294901760
        %v1226 = vsub.f32 %v172, %v1225
        %v1227 = vand.u32 %v1226, 4294901760
        %1228 = vmatpush1.msra.mxu0 %v1227
        %1229 = vmatprep.subr.mxu0 0.0
        %v1230 = vand.u32 %v171, 4294901760
        %v1231 = vsub.f32 %v171, %v1230
        %v1232 = vand.u32 %v1231, 4294901760
        %1233 = vmatpush1.msra.mxu0 %v1232
        %1234 = vmatprep.subr.mxu0 0.0
        %v1235 = vand.u32 %v170, 4294901760
        %v1236 = vsub.f32 %v170, %v1235
        %v1237 = vand.u32 %v1236, 4294901760
        %1238 = vmatpush1.msra.mxu0 %v1237
        %1239 = vmatprep.subr.mxu0 0.0
        %v1240 = vand.u32 %v169, 4294901760
        %v1241 = vsub.f32 %v169, %v1240
        %v1242 = vand.u32 %v1241, 4294901760
        %1243 = vmatpush1.msra.mxu0 %v1242
        %1244 = vmatprep.subr.mxu0 0.0
        %v1245 = vand.u32 %v168, 4294901760
        %v1246 = vsub.f32 %v168, %v1245
        %v1247 = vand.u32 %v1246, 4294901760
        %1248 = vmatpush1.msra.mxu0 %v1247
        %1249 = vmatprep.subr.mxu0 0.0
        %v1250 = vand.u32 %v167, 4294901760
        %v1251 = vsub.f32 %v167, %v1250
        %v1252 = vand.u32 %v1251, 4294901760
        %1253 = vmatpush1.msra.mxu0 %v1252
        %1254 = vmatprep.subr.mxu0 0.0
        %v1255 = vand.u32 %v166, 4294901760
        %v1256 = vsub.f32 %v166, %v1255
        %v1257 = vand.u32 %v1256, 4294901760
        %1258 = vmatpush1.msra.mxu0 %v1257
        %1259 = vmatprep.subr.mxu0 0.0
        %v1260 = vand.u32 %v165, 4294901760
        %v1261 = vsub.f32 %v165, %v1260
        %v1262 = vand.u32 %v1261, 4294901760
        %1263 = vmatpush1.msra.mxu0 %v1262
        %1264 = vmatprep.subr.mxu0 0.0
        %1265 = vmatpush2.msra.mxu0 0.0
        %1266 = vmatprep.subr.mxu0 0.0
        %1267 = vmatpush2.msra.mxu0 0.0
        %1268 = vmatprep.subr.mxu0 0.0
        %1269 = vmatpush2.msra.mxu0 0.0
        %1270 = vmatprep.subr.mxu0 0.0
        %1271 = vmatpush2.msra.mxu0 0.0
        %1272 = vmatprep.subr.mxu0 0.0
        %1273 = vmatpush2.msra.mxu0 0.0
        %1274 = vmatprep.subr.mxu0 0.0
        %1275 = vmatpush2.msra.mxu0 0.0
        %1276 = vmatprep.subr.mxu0 0.0
        %1277 = vmatpush2.msra.mxu0 0.0
        %1278 = vmatprep.subr.mxu0 0.0
        %1279 = vmatpush2.msra.mxu0 0.0
        %1280 = vmatprep.subr.mxu0 0.0
        %1281 = vmatpush2.msra.mxu0 0.0
        %1282 = vmatprep.subr.mxu0 0.0
        %1283 = vmatpush2.msra.mxu0 0.0
        %1284 = vmatprep.subr.mxu0 0.0
        %1285 = vmatpush2.msra.mxu0 0.0
        %1286 = vmatprep.subr.mxu0 0.0
        %1287 = vmatpush2.msra.mxu0 0.0
        %1288 = vmatprep.subr.mxu0 0.0
        %1289 = vmatpush2.msra.mxu0 0.0
        %1290 = vmatprep.subr.mxu0 0.0
        %1291 = vmatpush2.msra.mxu0 0.0
        %1292 = vmatprep.subr.mxu0 0.0
        %1293 = vmatpush2.msra.mxu0 0.0
        %1294 = vmatprep.subr.mxu0 0.0
        %1295 = vmatpush2.msra.mxu0 0.0
        %1296 = vmatprep.mubr.f32.mxu0 0.0
        %v1297 = vand.u32 %v712, 4294901760
        %1298 = vmatmul.mubr.f32.gmra.mxu0 %v1297
        %v1299 = vpop.f32.mrf.mxu0
        %v1300 = vadd.f32 %v1173, %v1299
        %v1301 = vpop.f32.mrf.mxu0
        %1302 = vmatprep.mubr.f32.mxu0 0.0
        %v1303 = vand.u32 %v713, 4294901760
        %1304 = vmatmul.mubr.f32.gmra.mxu0 %v1303
        %v1305 = vpop.f32.mrf.mxu0
        %v1306 = vadd.f32 %v1181, %v1305
        %v1307 = vpop.f32.mrf.mxu0
        %1308 = vdwg.mxu0
        %1309 = vmatprep.subr.mxu0 0.0
        %v1310 = vand.u32 %v180, 4294901760
        %1311 = vmatpush1.msra.mxu0 %v1310
        %1312 = vmatprep.subr.mxu0 0.0
        %v1313 = vand.u32 %v179, 4294901760
        %1314 = vmatpush1.msra.mxu0 %v1313
        %1315 = vmatprep.subr.mxu0 0.0
        %v1316 = vand.u32 %v178, 4294901760
        %1317 = vmatpush1.msra.mxu0 %v1316
        %1318 = vmatprep.subr.mxu0 0.0
        %v1319 = vand.u32 %v177, 4294901760
        %1320 = vmatpush1.msra.mxu0 %v1319
        %1321 = vmatprep.subr.mxu0 0.0
        %v1322 = vand.u32 %v176, 4294901760
        %1323 = vmatpush1.msra.mxu0 %v1322
        %1324 = vmatprep.subr.mxu0 0.0
        %v1325 = vand.u32 %v175, 4294901760
        %1326 = vmatpush1.msra.mxu0 %v1325
        %1327 = vmatprep.subr.mxu0 0.0
        %v1328 = vand.u32 %v174, 4294901760
        %1329 = vmatpush1.msra.mxu0 %v1328
        %1330 = vmatprep.subr.mxu0 0.0
        %v1331 = vand.u32 %v173, 4294901760
        %1332 = vmatpush1.msra.mxu0 %v1331
        %1333 = vmatprep.subr.mxu0 0.0
        %v1334 = vand.u32 %v172, 4294901760
        %1335 = vmatpush1.msra.mxu0 %v1334
        %1336 = vmatprep.subr.mxu0 0.0
        %v1337 = vand.u32 %v171, 4294901760
        %1338 = vmatpush1.msra.mxu0 %v1337
        %1339 = vmatprep.subr.mxu0 0.0
        %v1340 = vand.u32 %v170, 4294901760
        %1341 = vmatpush1.msra.mxu0 %v1340
        %1342 = vmatprep.subr.mxu0 0.0
        %v1343 = vand.u32 %v169, 4294901760
        %1344 = vmatpush1.msra.mxu0 %v1343
        %1345 = vmatprep.subr.mxu0 0.0
        %v1346 = vand.u32 %v168, 4294901760
        %1347 = vmatpush1.msra.mxu0 %v1346
        %1348 = vmatprep.subr.mxu0 0.0
        %v1349 = vand.u32 %v167, 4294901760
        %1350 = vmatpush1.msra.mxu0 %v1349
        %1351 = vmatprep.subr.mxu0 0.0
        %v1352 = vand.u32 %v166, 4294901760
        %1353 = vmatpush1.msra.mxu0 %v1352
        %1354 = vmatprep.subr.mxu0 0.0
        %v1355 = vand.u32 %v165, 4294901760
        %1356 = vmatpush1.msra.mxu0 %v1355
        %1357 = vmatprep.subr.mxu0 0.0
        %1358 = vmatpush2.msra.mxu0 0.0
        %1359 = vmatprep.subr.mxu0 0.0
        %1360 = vmatpush2.msra.mxu0 0.0
        %1361 = vmatprep.subr.mxu0 0.0
        %1362 = vmatpush2.msra.mxu0 0.0
        %1363 = vmatprep.subr.mxu0 0.0
        %1364 = vmatpush2.msra.mxu0 0.0
        %1365 = vmatprep.subr.mxu0 0.0
        %1366 = vmatpush2.msra.mxu0 0.0
        %1367 = vmatprep.subr.mxu0 0.0
        %1368 = vmatpush2.msra.mxu0 0.0
        %1369 = vmatprep.subr.mxu0 0.0
        %1370 = vmatpush2.msra.mxu0 0.0
        %1371 = vmatprep.subr.mxu0 0.0
        %1372 = vmatpush2.msra.mxu0 0.0
        %1373 = vmatprep.subr.mxu0 0.0
        %1374 = vmatpush2.msra.mxu0 0.0
        %1375 = vmatprep.subr.mxu0 0.0
        %1376 = vmatpush2.msra.mxu0 0.0
        %1377 = vmatprep.subr.mxu0 0.0
        %1378 = vmatpush2.msra.mxu0 0.0
        %1379 = vmatprep.subr.mxu0 0.0
        %1380 = vmatpush2.msra.mxu0 0.0
        %1381 = vmatprep.subr.mxu0 0.0
        %1382 = vmatpush2.msra.mxu0 0.0
        %1383 = vmatprep.subr.mxu0 0.0
        %1384 = vmatpush2.msra.mxu0 0.0
        %1385 = vmatprep.subr.mxu0 0.0
        %1386 = vmatpush2.msra.mxu0 0.0
        %1387 = vmatprep.subr.mxu0 0.0
        %1388 = vmatpush2.msra.mxu0 0.0
        %1389 = vmatprep.mubr.f32.mxu0 0.0
        %v1390 = vand.u32 %v712, 4294901760
        %1391 = vmatmul.mubr.f32.gmra.mxu0 %v1390
        %v1392 = vpop.f32.mrf.mxu0
        %v1393 = vadd.f32 %v1300, %v1392
        %v1394 = vpop.f32.mrf.mxu0
        %1395 = vmatprep.mubr.f32.mxu0 0.0
        %v1396 = vand.u32 %v713, 4294901760
        %1397 = vmatmul.mubr.f32.gmra.mxu0 %v1396
        %v1398 = vpop.f32.mrf.mxu0
        %v1399 = vadd.f32 %v1306, %v1398
        %v1400 = vpop.f32.mrf.mxu0
        %1401 = vdwg.mxu0
        %v1402 = vmax.f32 %v1393, 0.0
        %v1403 = vmax.f32 %v1399, 0.0
        %v1404 = vlaneseq
        %v1405 = vshrl.u32 %v1404, 7
        %v1406 = vsub.s32 0, %v1405
        %v1407 = vrot.slane %v198, %v1406
        %1408 = vmatprep.subr.mxu0 0.0
        %v1409 = vand.u32 %v197, 4294901760
        %1410 = vmatpush1.msra.mxu0 %v1409
        %1411 = vmatprep.subr.mxu0 0.0
        %v1412 = vand.u32 %v196, 4294901760
        %1413 = vmatpush1.msra.mxu0 %v1412
        %1414 = vmatprep.subr.mxu0 0.0
        %v1415 = vand.u32 %v195, 4294901760
        %1416 = vmatpush1.msra.mxu0 %v1415
        %1417 = vmatprep.subr.mxu0 0.0
        %v1418 = vand.u32 %v194, 4294901760
        %1419 = vmatpush1.msra.mxu0 %v1418
        %1420 = vmatprep.subr.mxu0 0.0
        %v1421 = vand.u32 %v193, 4294901760
        %1422 = vmatpush1.msra.mxu0 %v1421
        %1423 = vmatprep.subr.mxu0 0.0
        %v1424 = vand.u32 %v192, 4294901760
        %1425 = vmatpush1.msra.mxu0 %v1424
        %1426 = vmatprep.subr.mxu0 0.0
        %v1427 = vand.u32 %v191, 4294901760
        %1428 = vmatpush1.msra.mxu0 %v1427
        %1429 = vmatprep.subr.mxu0 0.0
        %v1430 = vand.u32 %v190, 4294901760
        %1431 = vmatpush1.msra.mxu0 %v1430
        %1432 = vmatprep.subr.mxu0 0.0
        %v1433 = vand.u32 %v189, 4294901760
        %1434 = vmatpush1.msra.mxu0 %v1433
        %1435 = vmatprep.subr.mxu0 0.0
        %v1436 = vand.u32 %v188, 4294901760
        %1437 = vmatpush1.msra.mxu0 %v1436
        %1438 = vmatprep.subr.mxu0 0.0
        %v1439 = vand.u32 %v187, 4294901760
        %1440 = vmatpush1.msra.mxu0 %v1439
        %1441 = vmatprep.subr.mxu0 0.0
        %v1442 = vand.u32 %v186, 4294901760
        %1443 = vmatpush1.msra.mxu0 %v1442
        %1444 = vmatprep.subr.mxu0 0.0
        %v1445 = vand.u32 %v185, 4294901760
        %1446 = vmatpush1.msra.mxu0 %v1445
        %1447 = vmatprep.subr.mxu0 0.0
        %v1448 = vand.u32 %v184, 4294901760
        %1449 = vmatpush1.msra.mxu0 %v1448
        %1450 = vmatprep.subr.mxu0 0.0
        %v1451 = vand.u32 %v183, 4294901760
        %1452 = vmatpush1.msra.mxu0 %v1451
        %1453 = vmatprep.subr.mxu0 0.0
        %v1454 = vand.u32 %v182, 4294901760
        %1455 = vmatpush1.msra.mxu0 %v1454
        %1456 = vmatprep.subr.mxu0 0.0
        %1457 = vmatpush2.msra.mxu0 0.0
        %1458 = vmatprep.subr.mxu0 0.0
        %1459 = vmatpush2.msra.mxu0 0.0
        %1460 = vmatprep.subr.mxu0 0.0
        %1461 = vmatpush2.msra.mxu0 0.0
        %1462 = vmatprep.subr.mxu0 0.0
        %1463 = vmatpush2.msra.mxu0 0.0
        %1464 = vmatprep.subr.mxu0 0.0
        %1465 = vmatpush2.msra.mxu0 0.0
        %1466 = vmatprep.subr.mxu0 0.0
        %1467 = vmatpush2.msra.mxu0 0.0
        %1468 = vmatprep.subr.mxu0 0.0
        %1469 = vmatpush2.msra.mxu0 0.0
        %1470 = vmatprep.subr.mxu0 0.0
        %1471 = vmatpush2.msra.mxu0 0.0
        %1472 = vmatprep.subr.mxu0 0.0
        %1473 = vmatpush2.msra.mxu0 0.0
        %1474 = vmatprep.subr.mxu0 0.0
        %1475 = vmatpush2.msra.mxu0 0.0
        %1476 = vmatprep.subr.mxu0 0.0
        %1477 = vmatpush2.msra.mxu0 0.0
        %1478 = vmatprep.subr.mxu0 0.0
        %1479 = vmatpush2.msra.mxu0 0.0
        %1480 = vmatprep.subr.mxu0 0.0
        %1481 = vmatpush2.msra.mxu0 0.0
        %1482 = vmatprep.subr.mxu0 0.0
        %1483 = vmatpush2.msra.mxu0 0.0
        %1484 = vmatprep.subr.mxu0 0.0
        %1485 = vmatpush2.msra.mxu0 0.0
        %1486 = vmatprep.subr.mxu0 0.0
        %1487 = vmatpush2.msra.mxu0 0.0
        %1488 = vmatprep.mubr.f32.mxu0 0.0
        %v1489 = vand.u32 %v1402, 4294901760
        %v1490 = vsub.f32 %v1402, %v1489
        %v1491 = vand.u32 %v1490, 4294901760
        %v1492 = vsub.f32 %v1490, %v1491
        %v1493 = vand.u32 %v1492, 4294901760
        %1494 = vmatmul.mubr.f32.gmra.mxu0 %v1493
        %v1495 = vpop.f32.mrf.mxu0
        %v1496 = vadd.f32 %v1407, %v1495
        %v1497 = vpop.f32.mrf.mxu0
        %1498 = vmatprep.mubr.f32.mxu0 0.0
        %v1499 = vand.u32 %v1403, 4294901760
        %v1500 = vsub.f32 %v1403, %v1499
        %v1501 = vand.u32 %v1500, 4294901760
        %v1502 = vsub.f32 %v1500, %v1501
        %v1503 = vand.u32 %v1502, 4294901760
        %1504 = vmatmul.mubr.f32.gmra.mxu0 %v1503
        %v1505 = vpop.f32.mrf.mxu0
        %v1506 = vadd.f32 %v1407, %v1505
        %v1507 = vpop.f32.mrf.mxu0
        %1508 = vdwg.mxu0
        %1509 = vmatprep.subr.mxu0 0.0
        %v1510 = vand.u32 %v197, 4294901760
        %v1511 = vsub.f32 %v197, %v1510
        %v1512 = vand.u32 %v1511, 4294901760
        %v1513 = vsub.f32 %v1511, %v1512
        %v1514 = vand.u32 %v1513, 4294901760
        %1515 = vmatpush1.msra.mxu0 %v1514
        %1516 = vmatprep.subr.mxu0 0.0
        %v1517 = vand.u32 %v196, 4294901760
        %v1518 = vsub.f32 %v196, %v1517
        %v1519 = vand.u32 %v1518, 4294901760
        %v1520 = vsub.f32 %v1518, %v1519
        %v1521 = vand.u32 %v1520, 4294901760
        %1522 = vmatpush1.msra.mxu0 %v1521
        %1523 = vmatprep.subr.mxu0 0.0
        %v1524 = vand.u32 %v195, 4294901760
        %v1525 = vsub.f32 %v195, %v1524
        %v1526 = vand.u32 %v1525, 4294901760
        %v1527 = vsub.f32 %v1525, %v1526
        %v1528 = vand.u32 %v1527, 4294901760
        %1529 = vmatpush1.msra.mxu0 %v1528
        %1530 = vmatprep.subr.mxu0 0.0
        %v1531 = vand.u32 %v194, 4294901760
        %v1532 = vsub.f32 %v194, %v1531
        %v1533 = vand.u32 %v1532, 4294901760
        %v1534 = vsub.f32 %v1532, %v1533
        %v1535 = vand.u32 %v1534, 4294901760
        %1536 = vmatpush1.msra.mxu0 %v1535
        %1537 = vmatprep.subr.mxu0 0.0
        %v1538 = vand.u32 %v193, 4294901760
        %v1539 = vsub.f32 %v193, %v1538
        %v1540 = vand.u32 %v1539, 4294901760
        %v1541 = vsub.f32 %v1539, %v1540
        %v1542 = vand.u32 %v1541, 4294901760
        %1543 = vmatpush1.msra.mxu0 %v1542
        %1544 = vmatprep.subr.mxu0 0.0
        %v1545 = vand.u32 %v192, 4294901760
        %v1546 = vsub.f32 %v192, %v1545
        %v1547 = vand.u32 %v1546, 4294901760
        %v1548 = vsub.f32 %v1546, %v1547
        %v1549 = vand.u32 %v1548, 4294901760
        %1550 = vmatpush1.msra.mxu0 %v1549
        %1551 = vmatprep.subr.mxu0 0.0
        %v1552 = vand.u32 %v191, 4294901760
        %v1553 = vsub.f32 %v191, %v1552
        %v1554 = vand.u32 %v1553, 4294901760
        %v1555 = vsub.f32 %v1553, %v1554
        %v1556 = vand.u32 %v1555, 4294901760
        %1557 = vmatpush1.msra.mxu0 %v1556
        %1558 = vmatprep.subr.mxu0 0.0
        %v1559 = vand.u32 %v190, 4294901760
        %v1560 = vsub.f32 %v190, %v1559
        %v1561 = vand.u32 %v1560, 4294901760
        %v1562 = vsub.f32 %v1560, %v1561
        %v1563 = vand.u32 %v1562, 4294901760
        %1564 = vmatpush1.msra.mxu0 %v1563
        %1565 = vmatprep.subr.mxu0 0.0
        %v1566 = vand.u32 %v189, 4294901760
        %v1567 = vsub.f32 %v189, %v1566
        %v1568 = vand.u32 %v1567, 4294901760
        %v1569 = vsub.f32 %v1567, %v1568
        %v1570 = vand.u32 %v1569, 4294901760
        %1571 = vmatpush1.msra.mxu0 %v1570
        %1572 = vmatprep.subr.mxu0 0.0
        %v1573 = vand.u32 %v188, 4294901760
        %v1574 = vsub.f32 %v188, %v1573
        %v1575 = vand.u32 %v1574, 4294901760
        %v1576 = vsub.f32 %v1574, %v1575
        %v1577 = vand.u32 %v1576, 4294901760
        %1578 = vmatpush1.msra.mxu0 %v1577
        %1579 = vmatprep.subr.mxu0 0.0
        %v1580 = vand.u32 %v187, 4294901760
        %v1581 = vsub.f32 %v187, %v1580
        %v1582 = vand.u32 %v1581, 4294901760
        %v1583 = vsub.f32 %v1581, %v1582
        %v1584 = vand.u32 %v1583, 4294901760
        %1585 = vmatpush1.msra.mxu0 %v1584
        %1586 = vmatprep.subr.mxu0 0.0
        %v1587 = vand.u32 %v186, 4294901760
        %v1588 = vsub.f32 %v186, %v1587
        %v1589 = vand.u32 %v1588, 4294901760
        %v1590 = vsub.f32 %v1588, %v1589
        %v1591 = vand.u32 %v1590, 4294901760
        %1592 = vmatpush1.msra.mxu0 %v1591
        %1593 = vmatprep.subr.mxu0 0.0
        %v1594 = vand.u32 %v185, 4294901760
        %v1595 = vsub.f32 %v185, %v1594
        %v1596 = vand.u32 %v1595, 4294901760
        %v1597 = vsub.f32 %v1595, %v1596
        %v1598 = vand.u32 %v1597, 4294901760
        %1599 = vmatpush1.msra.mxu0 %v1598
        %1600 = vmatprep.subr.mxu0 0.0
        %v1601 = vand.u32 %v184, 4294901760
        %v1602 = vsub.f32 %v184, %v1601
        %v1603 = vand.u32 %v1602, 4294901760
        %v1604 = vsub.f32 %v1602, %v1603
        %v1605 = vand.u32 %v1604, 4294901760
        %1606 = vmatpush1.msra.mxu0 %v1605
        %1607 = vmatprep.subr.mxu0 0.0
        %v1608 = vand.u32 %v183, 4294901760
        %v1609 = vsub.f32 %v183, %v1608
        %v1610 = vand.u32 %v1609, 4294901760
        %v1611 = vsub.f32 %v1609, %v1610
        %v1612 = vand.u32 %v1611, 4294901760
        %1613 = vmatpush1.msra.mxu0 %v1612
        %1614 = vmatprep.subr.mxu0 0.0
        %v1615 = vand.u32 %v182, 4294901760
        %v1616 = vsub.f32 %v182, %v1615
        %v1617 = vand.u32 %v1616, 4294901760
        %v1618 = vsub.f32 %v1616, %v1617
        %v1619 = vand.u32 %v1618, 4294901760
        %1620 = vmatpush1.msra.mxu0 %v1619
        %1621 = vmatprep.subr.mxu0 0.0
        %1622 = vmatpush2.msra.mxu0 0.0
        %1623 = vmatprep.subr.mxu0 0.0
        %1624 = vmatpush2.msra.mxu0 0.0
        %1625 = vmatprep.subr.mxu0 0.0
        %1626 = vmatpush2.msra.mxu0 0.0
        %1627 = vmatprep.subr.mxu0 0.0
        %1628 = vmatpush2.msra.mxu0 0.0
        %1629 = vmatprep.subr.mxu0 0.0
        %1630 = vmatpush2.msra.mxu0 0.0
        %1631 = vmatprep.subr.mxu0 0.0
        %1632 = vmatpush2.msra.mxu0 0.0
        %1633 = vmatprep.subr.mxu0 0.0
        %1634 = vmatpush2.msra.mxu0 0.0
        %1635 = vmatprep.subr.mxu0 0.0
        %1636 = vmatpush2.msra.mxu0 0.0
        %1637 = vmatprep.subr.mxu0 0.0
        %1638 = vmatpush2.msra.mxu0 0.0
        %1639 = vmatprep.subr.mxu0 0.0
        %1640 = vmatpush2.msra.mxu0 0.0
        %1641 = vmatprep.subr.mxu0 0.0
        %1642 = vmatpush2.msra.mxu0 0.0
        %1643 = vmatprep.subr.mxu0 0.0
        %1644 = vmatpush2.msra.mxu0 0.0
        %1645 = vmatprep.subr.mxu0 0.0
        %1646 = vmatpush2.msra.mxu0 0.0
        %1647 = vmatprep.subr.mxu0 0.0
        %1648 = vmatpush2.msra.mxu0 0.0
        %1649 = vmatprep.subr.mxu0 0.0
        %1650 = vmatpush2.msra.mxu0 0.0
        %1651 = vmatprep.subr.mxu0 0.0
        %1652 = vmatpush2.msra.mxu0 0.0
        %1653 = vmatprep.mubr.f32.mxu0 0.0
        %v1654 = vand.u32 %v1402, 4294901760
        %1655 = vmatmul.mubr.f32.gmra.mxu0 %v1654
        %v1656 = vpop.f32.mrf.mxu0
        %v1657 = vadd.f32 %v1496, %v1656
        %v1658 = vpop.f32.mrf.mxu0
        %1659 = vmatprep.mubr.f32.mxu0 0.0
        %v1660 = vand.u32 %v1403, 4294901760
        %1661 = vmatmul.mubr.f32.gmra.mxu0 %v1660
        %v1662 = vpop.f32.mrf.mxu0
        %v1663 = vadd.f32 %v1506, %v1662
        %v1664 = vpop.f32.mrf.mxu0
        %1665 = vdwg.mxu0
        %1666 = vmatprep.subr.mxu0 0.0
        %v1667 = vand.u32 %v197, 4294901760
        %v1668 = vsub.f32 %v197, %v1667
        %1669 = vmatpush1.msra.mxu0 %v1668
        %1670 = vmatprep.subr.mxu0 0.0
        %v1671 = vand.u32 %v196, 4294901760
        %v1672 = vsub.f32 %v196, %v1671
        %1673 = vmatpush1.msra.mxu0 %v1672
        %1674 = vmatprep.subr.mxu0 0.0
        %v1675 = vand.u32 %v195, 4294901760
        %v1676 = vsub.f32 %v195, %v1675
        %1677 = vmatpush1.msra.mxu0 %v1676
        %1678 = vmatprep.subr.mxu0 0.0
        %v1679 = vand.u32 %v194, 4294901760
        %v1680 = vsub.f32 %v194, %v1679
        %1681 = vmatpush1.msra.mxu0 %v1680
        %1682 = vmatprep.subr.mxu0 0.0
        %v1683 = vand.u32 %v193, 4294901760
        %v1684 = vsub.f32 %v193, %v1683
        %1685 = vmatpush1.msra.mxu0 %v1684
        %1686 = vmatprep.subr.mxu0 0.0
        %v1687 = vand.u32 %v192, 4294901760
        %v1688 = vsub.f32 %v192, %v1687
        %1689 = vmatpush1.msra.mxu0 %v1688
        %1690 = vmatprep.subr.mxu0 0.0
        %v1691 = vand.u32 %v191, 4294901760
        %v1692 = vsub.f32 %v191, %v1691
        %1693 = vmatpush1.msra.mxu0 %v1692
        %1694 = vmatprep.subr.mxu0 0.0
        %v1695 = vand.u32 %v190, 4294901760
        %v1696 = vsub.f32 %v190, %v1695
        %1697 = vmatpush1.msra.mxu0 %v1696
        %1698 = vmatprep.subr.mxu0 0.0
        %v1699 = vand.u32 %v189, 4294901760
        %v1700 = vsub.f32 %v189, %v1699
        %1701 = vmatpush1.msra.mxu0 %v1700
        %1702 = vmatprep.subr.mxu0 0.0
        %v1703 = vand.u32 %v188, 4294901760
        %v1704 = vsub.f32 %v188, %v1703
        %1705 = vmatpush1.msra.mxu0 %v1704
        %1706 = vmatprep.subr.mxu0 0.0
        %v1707 = vand.u32 %v187, 4294901760
        %v1708 = vsub.f32 %v187, %v1707
        %1709 = vmatpush1.msra.mxu0 %v1708
        %1710 = vmatprep.subr.mxu0 0.0
        %v1711 = vand.u32 %v186, 4294901760
        %v1712 = vsub.f32 %v186, %v1711
        %1713 = vmatpush1.msra.mxu0 %v1712
        %1714 = vmatprep.subr.mxu0 0.0
        %v1715 = vand.u32 %v185, 4294901760
        %v1716 = vsub.f32 %v185, %v1715
        %1717 = vmatpush1.msra.mxu0 %v1716
        %1718 = vmatprep.subr.mxu0 0.0
        %v1719 = vand.u32 %v184, 4294901760
        %v1720 = vsub.f32 %v184, %v1719
        %1721 = vmatpush1.msra.mxu0 %v1720
        %1722 = vmatprep.subr.mxu0 0.0
        %v1723 = vand.u32 %v183, 4294901760
        %v1724 = vsub.f32 %v183, %v1723
        %1725 = vmatpush1.msra.mxu0 %v1724
        %1726 = vmatprep.subr.mxu0 0.0
        %v1727 = vand.u32 %v182, 4294901760
        %v1728 = vsub.f32 %v182, %v1727
        %1729 = vmatpush1.msra.mxu0 %v1728
        %1730 = vmatprep.subr.mxu0 0.0
        %1731 = vmatpush2.msra.mxu0 0.0
        %1732 = vmatprep.subr.mxu0 0.0
        %1733 = vmatpush2.msra.mxu0 0.0
        %1734 = vmatprep.subr.mxu0 0.0
        %1735 = vmatpush2.msra.mxu0 0.0
        %1736 = vmatprep.subr.mxu0 0.0
        %1737 = vmatpush2.msra.mxu0 0.0
        %1738 = vmatprep.subr.mxu0 0.0
        %1739 = vmatpush2.msra.mxu0 0.0
        %1740 = vmatprep.subr.mxu0 0.0
        %1741 = vmatpush2.msra.mxu0 0.0
        %1742 = vmatprep.subr.mxu0 0.0
        %1743 = vmatpush2.msra.mxu0 0.0
        %1744 = vmatprep.subr.mxu0 0.0
        %1745 = vmatpush2.msra.mxu0 0.0
        %1746 = vmatprep.subr.mxu0 0.0
        %1747 = vmatpush2.msra.mxu0 0.0
        %1748 = vmatprep.subr.mxu0 0.0
        %1749 = vmatpush2.msra.mxu0 0.0
        %1750 = vmatprep.subr.mxu0 0.0
        %1751 = vmatpush2.msra.mxu0 0.0
        %1752 = vmatprep.subr.mxu0 0.0
        %1753 = vmatpush2.msra.mxu0 0.0
        %1754 = vmatprep.subr.mxu0 0.0
        %1755 = vmatpush2.msra.mxu0 0.0
        %1756 = vmatprep.subr.mxu0 0.0
        %1757 = vmatpush2.msra.mxu0 0.0
        %1758 = vmatprep.subr.mxu0 0.0
        %1759 = vmatpush2.msra.mxu0 0.0
        %1760 = vmatprep.subr.mxu0 0.0
        %1761 = vmatpush2.msra.mxu0 0.0
        %1762 = vmatprep.mubr.f32.mxu0 0.0
        %v1763 = vand.u32 %v1402, 4294901760
        %v1764 = vsub.f32 %v1402, %v1763
        %1765 = vmatmul.mubr.f32.gmra.mxu0 %v1764
        %v1766 = vpop.f32.mrf.mxu0
        %v1767 = vadd.f32 %v1657, %v1766
        %v1768 = vpop.f32.mrf.mxu0
        %1769 = vmatprep.mubr.f32.mxu0 0.0
        %v1770 = vand.u32 %v1403, 4294901760
        %v1771 = vsub.f32 %v1403, %v1770
        %1772 = vmatmul.mubr.f32.gmra.mxu0 %v1771
        %v1773 = vpop.f32.mrf.mxu0
        %v1774 = vadd.f32 %v1663, %v1773
        %v1775 = vpop.f32.mrf.mxu0
        %1776 = vdwg.mxu0
        %1777 = vmatprep.subr.mxu0 0.0
        %v1778 = vand.u32 %v197, 4294901760
        %1779 = vmatpush1.msra.mxu0 %v1778
        %1780 = vmatprep.subr.mxu0 0.0
        %v1781 = vand.u32 %v196, 4294901760
        %1782 = vmatpush1.msra.mxu0 %v1781
        %1783 = vmatprep.subr.mxu0 0.0
        %v1784 = vand.u32 %v195, 4294901760
        %1785 = vmatpush1.msra.mxu0 %v1784
        %1786 = vmatprep.subr.mxu0 0.0
        %v1787 = vand.u32 %v194, 4294901760
        %1788 = vmatpush1.msra.mxu0 %v1787
        %1789 = vmatprep.subr.mxu0 0.0
        %v1790 = vand.u32 %v193, 4294901760
        %1791 = vmatpush1.msra.mxu0 %v1790
        %1792 = vmatprep.subr.mxu0 0.0
        %v1793 = vand.u32 %v192, 4294901760
        %1794 = vmatpush1.msra.mxu0 %v1793
        %1795 = vmatprep.subr.mxu0 0.0
        %v1796 = vand.u32 %v191, 4294901760
        %1797 = vmatpush1.msra.mxu0 %v1796
        %1798 = vmatprep.subr.mxu0 0.0
        %v1799 = vand.u32 %v190, 4294901760
        %1800 = vmatpush1.msra.mxu0 %v1799
        %1801 = vmatprep.subr.mxu0 0.0
        %v1802 = vand.u32 %v189, 4294901760
        %1803 = vmatpush1.msra.mxu0 %v1802
        %1804 = vmatprep.subr.mxu0 0.0
        %v1805 = vand.u32 %v188, 4294901760
        %1806 = vmatpush1.msra.mxu0 %v1805
        %1807 = vmatprep.subr.mxu0 0.0
        %v1808 = vand.u32 %v187, 4294901760
        %1809 = vmatpush1.msra.mxu0 %v1808
        %1810 = vmatprep.subr.mxu0 0.0
        %v1811 = vand.u32 %v186, 4294901760
        %1812 = vmatpush1.msra.mxu0 %v1811
        %1813 = vmatprep.subr.mxu0 0.0
        %v1814 = vand.u32 %v185, 4294901760
        %1815 = vmatpush1.msra.mxu0 %v1814
        %1816 = vmatprep.subr.mxu0 0.0
        %v1817 = vand.u32 %v184, 4294901760
        %1818 = vmatpush1.msra.mxu0 %v1817
        %1819 = vmatprep.subr.mxu0 0.0
        %v1820 = vand.u32 %v183, 4294901760
        %1821 = vmatpush1.msra.mxu0 %v1820
        %1822 = vmatprep.subr.mxu0 0.0
        %v1823 = vand.u32 %v182, 4294901760
        %1824 = vmatpush1.msra.mxu0 %v1823
        %1825 = vmatprep.subr.mxu0 0.0
        %1826 = vmatpush2.msra.mxu0 0.0
        %1827 = vmatprep.subr.mxu0 0.0
        %1828 = vmatpush2.msra.mxu0 0.0
        %1829 = vmatprep.subr.mxu0 0.0
        %1830 = vmatpush2.msra.mxu0 0.0
        %1831 = vmatprep.subr.mxu0 0.0
        %1832 = vmatpush2.msra.mxu0 0.0
        %1833 = vmatprep.subr.mxu0 0.0
        %1834 = vmatpush2.msra.mxu0 0.0
        %1835 = vmatprep.subr.mxu0 0.0
        %1836 = vmatpush2.msra.mxu0 0.0
        %1837 = vmatprep.subr.mxu0 0.0
        %1838 = vmatpush2.msra.mxu0 0.0
        %1839 = vmatprep.subr.mxu0 0.0
        %1840 = vmatpush2.msra.mxu0 0.0
        %1841 = vmatprep.subr.mxu0 0.0
        %1842 = vmatpush2.msra.mxu0 0.0
        %1843 = vmatprep.subr.mxu0 0.0
        %1844 = vmatpush2.msra.mxu0 0.0
        %1845 = vmatprep.subr.mxu0 0.0
        %1846 = vmatpush2.msra.mxu0 0.0
        %1847 = vmatprep.subr.mxu0 0.0
        %1848 = vmatpush2.msra.mxu0 0.0
        %1849 = vmatprep.subr.mxu0 0.0
        %1850 = vmatpush2.msra.mxu0 0.0
        %1851 = vmatprep.subr.mxu0 0.0
        %1852 = vmatpush2.msra.mxu0 0.0
        %1853 = vmatprep.subr.mxu0 0.0
        %1854 = vmatpush2.msra.mxu0 0.0
        %1855 = vmatprep.subr.mxu0 0.0
        %1856 = vmatpush2.msra.mxu0 0.0
        %1857 = vmatprep.mubr.f32.mxu0 0.0
        %v1858 = vand.u32 %v1402, 4294901760
        %v1859 = vsub.f32 %v1402, %v1858
        %v1860 = vand.u32 %v1859, 4294901760
        %1861 = vmatmul.mubr.f32.gmra.mxu0 %v1860
        %v1862 = vpop.f32.mrf.mxu0
        %v1863 = vadd.f32 %v1767, %v1862
        %v1864 = vpop.f32.mrf.mxu0
        %1865 = vmatprep.mubr.f32.mxu0 0.0
        %v1866 = vand.u32 %v1403, 4294901760
        %v1867 = vsub.f32 %v1403, %v1866
        %v1868 = vand.u32 %v1867, 4294901760
        %1869 = vmatmul.mubr.f32.gmra.mxu0 %v1868
        %v1870 = vpop.f32.mrf.mxu0
        %v1871 = vadd.f32 %v1774, %v1870
        %v1872 = vpop.f32.mrf.mxu0
        %1873 = vdwg.mxu0
        %1874 = vmatprep.subr.mxu0 0.0
        %v1875 = vand.u32 %v197, 4294901760
        %v1876 = vsub.f32 %v197, %v1875
        %v1877 = vand.u32 %v1876, 4294901760
        %1878 = vmatpush1.msra.mxu0 %v1877
        %1879 = vmatprep.subr.mxu0 0.0
        %v1880 = vand.u32 %v196, 4294901760
        %v1881 = vsub.f32 %v196, %v1880
        %v1882 = vand.u32 %v1881, 4294901760
        %1883 = vmatpush1.msra.mxu0 %v1882
        %1884 = vmatprep.subr.mxu0 0.0
        %v1885 = vand.u32 %v195, 4294901760
        %v1886 = vsub.f32 %v195, %v1885
        %v1887 = vand.u32 %v1886, 4294901760
        %1888 = vmatpush1.msra.mxu0 %v1887
        %1889 = vmatprep.subr.mxu0 0.0
        %v1890 = vand.u32 %v194, 4294901760
        %v1891 = vsub.f32 %v194, %v1890
        %v1892 = vand.u32 %v1891, 4294901760
        %1893 = vmatpush1.msra.mxu0 %v1892
        %1894 = vmatprep.subr.mxu0 0.0
        %v1895 = vand.u32 %v193, 4294901760
        %v1896 = vsub.f32 %v193, %v1895
        %v1897 = vand.u32 %v1896, 4294901760
        %1898 = vmatpush1.msra.mxu0 %v1897
        %1899 = vmatprep.subr.mxu0 0.0
        %v1900 = vand.u32 %v192, 4294901760
        %v1901 = vsub.f32 %v192, %v1900
        %v1902 = vand.u32 %v1901, 4294901760
        %1903 = vmatpush1.msra.mxu0 %v1902
        %1904 = vmatprep.subr.mxu0 0.0
        %v1905 = vand.u32 %v191, 4294901760
        %v1906 = vsub.f32 %v191, %v1905
        %v1907 = vand.u32 %v1906, 4294901760
        %1908 = vmatpush1.msra.mxu0 %v1907
        %1909 = vmatprep.subr.mxu0 0.0
        %v1910 = vand.u32 %v190, 4294901760
        %v1911 = vsub.f32 %v190, %v1910
        %v1912 = vand.u32 %v1911, 4294901760
        %1913 = vmatpush1.msra.mxu0 %v1912
        %1914 = vmatprep.subr.mxu0 0.0
        %v1915 = vand.u32 %v189, 4294901760
        %v1916 = vsub.f32 %v189, %v1915
        %v1917 = vand.u32 %v1916, 4294901760
        %1918 = vmatpush1.msra.mxu0 %v1917
        %1919 = vmatprep.subr.mxu0 0.0
        %v1920 = vand.u32 %v188, 4294901760
        %v1921 = vsub.f32 %v188, %v1920
        %v1922 = vand.u32 %v1921, 4294901760
        %1923 = vmatpush1.msra.mxu0 %v1922
        %1924 = vmatprep.subr.mxu0 0.0
        %v1925 = vand.u32 %v187, 4294901760
        %v1926 = vsub.f32 %v187, %v1925
        %v1927 = vand.u32 %v1926, 4294901760
        %1928 = vmatpush1.msra.mxu0 %v1927
        %1929 = vmatprep.subr.mxu0 0.0
        %v1930 = vand.u32 %v186, 4294901760
        %v1931 = vsub.f32 %v186, %v1930
        %v1932 = vand.u32 %v1931, 4294901760
        %1933 = vmatpush1.msra.mxu0 %v1932
        %1934 = vmatprep.subr.mxu0 0.0
        %v1935 = vand.u32 %v185, 4294901760
        %v1936 = vsub.f32 %v185, %v1935
        %v1937 = vand.u32 %v1936, 4294901760
        %1938 = vmatpush1.msra.mxu0 %v1937
        %1939 = vmatprep.subr.mxu0 0.0
        %v1940 = vand.u32 %v184, 4294901760
        %v1941 = vsub.f32 %v184, %v1940
        %v1942 = vand.u32 %v1941, 4294901760
        %1943 = vmatpush1.msra.mxu0 %v1942
        %1944 = vmatprep.subr.mxu0 0.0
        %v1945 = vand.u32 %v183, 4294901760
        %v1946 = vsub.f32 %v183, %v1945
        %v1947 = vand.u32 %v1946, 4294901760
        %1948 = vmatpush1.msra.mxu0 %v1947
        %1949 = vmatprep.subr.mxu0 0.0
        %v1950 = vand.u32 %v182, 4294901760
        %v1951 = vsub.f32 %v182, %v1950
        %v1952 = vand.u32 %v1951, 4294901760
        %1953 = vmatpush1.msra.mxu0 %v1952
        %1954 = vmatprep.subr.mxu0 0.0
        %1955 = vmatpush2.msra.mxu0 0.0
        %1956 = vmatprep.subr.mxu0 0.0
        %1957 = vmatpush2.msra.mxu0 0.0
        %1958 = vmatprep.subr.mxu0 0.0
        %1959 = vmatpush2.msra.mxu0 0.0
        %1960 = vmatprep.subr.mxu0 0.0
        %1961 = vmatpush2.msra.mxu0 0.0
        %1962 = vmatprep.subr.mxu0 0.0
        %1963 = vmatpush2.msra.mxu0 0.0
        %1964 = vmatprep.subr.mxu0 0.0
        %1965 = vmatpush2.msra.mxu0 0.0
        %1966 = vmatprep.subr.mxu0 0.0
        %1967 = vmatpush2.msra.mxu0 0.0
        %1968 = vmatprep.subr.mxu0 0.0
        %1969 = vmatpush2.msra.mxu0 0.0
        %1970 = vmatprep.subr.mxu0 0.0
        %1971 = vmatpush2.msra.mxu0 0.0
        %1972 = vmatprep.subr.mxu0 0.0
        %1973 = vmatpush2.msra.mxu0 0.0
        %1974 = vmatprep.subr.mxu0 0.0
        %1975 = vmatpush2.msra.mxu0 0.0
        %1976 = vmatprep.subr.mxu0 0.0
        %1977 = vmatpush2.msra.mxu0 0.0
        %1978 = vmatprep.subr.mxu0 0.0
        %1979 = vmatpush2.msra.mxu0 0.0
        %1980 = vmatprep.subr.mxu0 0.0
        %1981 = vmatpush2.msra.mxu0 0.0
        %1982 = vmatprep.subr.mxu0 0.0
        %1983 = vmatpush2.msra.mxu0 0.0
        %1984 = vmatprep.subr.mxu0 0.0
        %1985 = vmatpush2.msra.mxu0 0.0
        %1986 = vmatprep.mubr.f32.mxu0 0.0
        %v1987 = vand.u32 %v1402, 4294901760
        %1988 = vmatmul.mubr.f32.gmra.mxu0 %v1987
        %v1989 = vpop.f32.mrf.mxu0
        %v1990 = vadd.f32 %v1863, %v1989
        %v1991 = vpop.f32.mrf.mxu0
        %1992 = vmatprep.mubr.f32.mxu0 0.0
        %v1993 = vand.u32 %v1403, 4294901760
        %1994 = vmatmul.mubr.f32.gmra.mxu0 %v1993
        %v1995 = vpop.f32.mrf.mxu0
        %v1996 = vadd.f32 %v1871, %v1995
        %v1997 = vpop.f32.mrf.mxu0
        %1998 = vdwg.mxu0
        %1999 = vmatprep.subr.mxu0 0.0
        %v2000 = vand.u32 %v197, 4294901760
        %2001 = vmatpush1.msra.mxu0 %v2000
        %2002 = vmatprep.subr.mxu0 0.0
        %v2003 = vand.u32 %v196, 4294901760
        %2004 = vmatpush1.msra.mxu0 %v2003
        %2005 = vmatprep.subr.mxu0 0.0
        %v2006 = vand.u32 %v195, 4294901760
        %2007 = vmatpush1.msra.mxu0 %v2006
        %2008 = vmatprep.subr.mxu0 0.0
        %v2009 = vand.u32 %v194, 4294901760
        %2010 = vmatpush1.msra.mxu0 %v2009
        %2011 = vmatprep.subr.mxu0 0.0
        %v2012 = vand.u32 %v193, 4294901760
        %2013 = vmatpush1.msra.mxu0 %v2012
        %2014 = vmatprep.subr.mxu0 0.0
        %v2015 = vand.u32 %v192, 4294901760
        %2016 = vmatpush1.msra.mxu0 %v2015
        %2017 = vmatprep.subr.mxu0 0.0
        %v2018 = vand.u32 %v191, 4294901760
        %2019 = vmatpush1.msra.mxu0 %v2018
        %2020 = vmatprep.subr.mxu0 0.0
        %v2021 = vand.u32 %v190, 4294901760
        %2022 = vmatpush1.msra.mxu0 %v2021
        %2023 = vmatprep.subr.mxu0 0.0
        %v2024 = vand.u32 %v189, 4294901760
        %2025 = vmatpush1.msra.mxu0 %v2024
        %2026 = vmatprep.subr.mxu0 0.0
        %v2027 = vand.u32 %v188, 4294901760
        %2028 = vmatpush1.msra.mxu0 %v2027
        %2029 = vmatprep.subr.mxu0 0.0
        %v2030 = vand.u32 %v187, 4294901760
        %2031 = vmatpush1.msra.mxu0 %v2030
        %2032 = vmatprep.subr.mxu0 0.0
        %v2033 = vand.u32 %v186, 4294901760
        %2034 = vmatpush1.msra.mxu0 %v2033
        %2035 = vmatprep.subr.mxu0 0.0
        %v2036 = vand.u32 %v185, 4294901760
        %2037 = vmatpush1.msra.mxu0 %v2036
        %2038 = vmatprep.subr.mxu0 0.0
        %v2039 = vand.u32 %v184, 4294901760
        %2040 = vmatpush1.msra.mxu0 %v2039
        %2041 = vmatprep.subr.mxu0 0.0
        %v2042 = vand.u32 %v183, 4294901760
        %2043 = vmatpush1.msra.mxu0 %v2042
        %2044 = vmatprep.subr.mxu0 0.0
        %v2045 = vand.u32 %v182, 4294901760
        %2046 = vmatpush1.msra.mxu0 %v2045
        %2047 = vmatprep.subr.mxu0 0.0
        %2048 = vmatpush2.msra.mxu0 0.0
        %2049 = vmatprep.subr.mxu0 0.0
        %2050 = vmatpush2.msra.mxu0 0.0
        %2051 = vmatprep.subr.mxu0 0.0
        %2052 = vmatpush2.msra.mxu0 0.0
        %2053 = vmatprep.subr.mxu0 0.0
        %2054 = vmatpush2.msra.mxu0 0.0
        %2055 = vmatprep.subr.mxu0 0.0
        %2056 = vmatpush2.msra.mxu0 0.0
        %2057 = vmatprep.subr.mxu0 0.0
        %2058 = vmatpush2.msra.mxu0 0.0
        %2059 = vmatprep.subr.mxu0 0.0
        %2060 = vmatpush2.msra.mxu0 0.0
        %2061 = vmatprep.subr.mxu0 0.0
        %2062 = vmatpush2.msra.mxu0 0.0
        %2063 = vmatprep.subr.mxu0 0.0
        %2064 = vmatpush2.msra.mxu0 0.0
        %2065 = vmatprep.subr.mxu0 0.0
        %2066 = vmatpush2.msra.mxu0 0.0
        %2067 = vmatprep.subr.mxu0 0.0
        %2068 = vmatpush2.msra.mxu0 0.0
        %2069 = vmatprep.subr.mxu0 0.0
        %2070 = vmatpush2.msra.mxu0 0.0
        %2071 = vmatprep.subr.mxu0 0.0
        %2072 = vmatpush2.msra.mxu0 0.0
        %2073 = vmatprep.subr.mxu0 0.0
        %2074 = vmatpush2.msra.mxu0 0.0
        %2075 = vmatprep.subr.mxu0 0.0
        %2076 = vmatpush2.msra.mxu0 0.0
        %2077 = vmatprep.subr.mxu0 0.0
        %2078 = vmatpush2.msra.mxu0 0.0
        %2079 = vmatprep.mubr.f32.mxu0 0.0
        %v2080 = vand.u32 %v1402, 4294901760
        %2081 = vmatmul.mubr.f32.gmra.mxu0 %v2080
        %v2082 = vpop.f32.mrf.mxu0
        %v2083 = vadd.f32 %v1990, %v2082
        %v2084 = vpop.f32.mrf.mxu0
        %2085 = vmatprep.mubr.f32.mxu0 0.0
        %v2086 = vand.u32 %v1403, 4294901760
        %2087 = vmatmul.mubr.f32.gmra.mxu0 %v2086
        %v2088 = vpop.f32.mrf.mxu0
        %v2089 = vadd.f32 %v1996, %v2088
        %v2090 = vpop.f32.mrf.mxu0
        %2091 = vdwg.mxu0
        %v2092 = vlaneseq
        %v2093 = vand.u32 %v2092, 127
        %vm2094 = vcmp.ge.s32.totalorder %v2093, 6
        %vm2095 = vcmp.lt.s32.totalorder %v2093, 12
        %vm2096 = vmand %vm2094, %vm2095
        %vm2097 = vcmp.eq.s32.totalorder %v2093, 13
        %vm2098 = vmor %vm2096, %vm2097
        %vm2099 = vcmp.eq.s32.totalorder %v2093, 17
        %vm2100 = vmor %vm2098, %vm2099
        %v2101 = vmul.f32 %v2083, 1.442695
        %v2102 = vpow.pop %v2101
        %v2103 = vmul.f32 %v2089, 1.442695
        %v2104 = vpow.pop %v2103
        %v2105 = vsel %vm2100, %v2102, %v2083
        %v2106 = vsel %vm2100, %v2104, %v2089
        %2107 = vrot.lane.b32.xlu0 %v2105, 124
        %v2108 = vpop.permute.xlu0 %2107
        %2109 = vrot.lane.b32.xlu0 %v2106, 124
        %v2110 = vpop.permute.xlu0 %2109
        %vm2111 = vcmp.eq.s32.totalorder %v2093, 12
        %vm2112 = vmor %vm2111, %vm2097
        %v2113 = vsub.f32 %v2108, %v2105
        %v2114 = vsub.f32 %v2110, %v2106
        %v2115 = vsel %vm2112, %v2113, 0.0
        %v2116 = vsel %vm2112, %v2114, 0.0
        %2117 = vset.pattern.permute.xlu0 8
        %2118 = vperm.xlu0 %2117, %v160
        %v2119 = vpop.permute.xlu0 %2118
        %2121 = vset.pattern.permute.xlu0 8
        %2122 = vperm.xlu0 %2121, %v161
        %v2123 = vpop.permute.xlu0 %2122
        %v2125 = vmul.f32 %v2119, %v2115
        %v2126 = vmul.f32 %v2123, %v2116
        %v2127 = vadd.f32 %v2105, %v2125
        %v2128 = vadd.f32 %v2106, %v2126
        %2129 = vst [vmem:[%s152] sm:$0xff] %v2127
        %2130 = vst [vmem:[%s152 + $0x8] sm:$0xff] %v2128
        %s2131 = sand.u32 %s72, 1
        %s2132 = scalar_lea.sflag [#allocation4], %s2131
        %s2133 = sand.u32 %s72, 1
        %s2134 = smul.addr %s2133, 16
        %s2135 = scalar_lea.vmem [#allocation5], %s2134
        // Predicated region
        $region33: #{tpu_custom_call.1} parent=27 // pred_check
          %p2136 = pneg %p82
        $region34: #{tpu_custom_call.1} parent=27 // pred_check_branch
          %2138 = sbr.rel (%p2136) target = $region36
        $region35: #{tpu_custom_call.1} parent=27 // pred_region
          %s2139 = smul.u32 2, %s17
          %s2141 = ssub.s32 256, 256
          %2142 = vsyncadd %s2132, %s2141
          %s2143 = smul.addr %s2139, 128
          %s2144 = scalar_lea.hbm %s2, %s2143
          %s2145 = sshll.u32 %s2135, 4
          %s2146 = int_to_ptr.vmem [resolvable:$true] %s2145
          %2151 = dma.vmem_to_hbm [thread:$0]  %s2146, 256, %s2144, %s2132, 128, 128, 8
        $region36: #{tpu_custom_call.1} parent=27 // pred_fallthru
          _
      $region28: #{tpu_custom_call.1} parent=5 // pred_fallthru
        _
      %p2152 = scmp.le.s32.totalorder 2, %s12
      // Predicated region
      $region37: #{tpu_custom_call.1} parent=5 // pred_check
        %p2153 = pneg %p2152
      $region38: #{tpu_custom_call.1} parent=5 // pred_check_branch
        %2155 = sbr.rel (%p2153) target = $region40
      $region39: #{tpu_custom_call.1} parent=5 // pred_region
        %s2156 = ssub.s32 %s12, 2
        // Predicated region
        $region41: #{tpu_custom_call.1} parent=39 // pred_check
          %p2157 = pneg %p88
        $region42: #{tpu_custom_call.1} parent=39 // pred_check_branch
          %2159 = sbr.rel (%p2157) target = $region44
        $region43: #{tpu_custom_call.1} parent=39 // pred_region
          %s2160 = sand.u32 %s73, 1
          %s2161 = scalar_lea.sflag [#allocation4], %s2160
          %s2162 = sand.u32 %s73, 1
          %s2163 = smul.addr %s2162, 16
          %s2164 = scalar_lea.vmem [#allocation5], %s2163
          %2165 = dma.done %s2161, 256
        $region44: #{tpu_custom_call.1} parent=39 // pred_fallthru
          _
      $region40: #{tpu_custom_call.1} parent=5 // pred_fallthru
        _
    $region6: #{tpu_custom_call.1} parent=1 // loop_footer
      %s16 = sadd.s32 1, %s12
    $region7: #{tpu_custom_call.1} parent=1 // loop_footer_branch
      %11 = sbr.rel target = $region3
    $region8: #{tpu_custom_call.1} parent=1 // loop_exit
      _
    %2166 = vsyncpa [#allocation3], 1
    %s2167 = scalar_lea.sflag [#allocation3], 1
    %2168 = vsyncpa %s2167, 1
    %2169 = vsyncpa [#allocation4], 1
    %s2170 = scalar_lea.sflag [#allocation4], 1
    %2171 = vsyncpa %s2170, 1

</llo_original>
